<compile_context>
chip_gen: v7x
topology: tpu7x:2x2x1
jax: 0.10.0
libtpu: 0.0.40
codegen_flags: <defaults>
</compile_context>

<pallas_src>
import functools
import math

import jax
import jax.numpy as jnp
from jax import lax
from jax.experimental import pallas as pl
from jax.experimental.pallas import tpu as pltpu


def _mha_kernel(q_ref, k_ref, v_ref,
                wq_ref, bq_ref, wk_ref, bk_ref, wv_ref, bv_ref,
                gamma_ref, beta_ref,
                out_ref,
                *, n_heads, head_dim, eps, compute_dtype):
    b_blk, t_q, qdim = q_ref.shape
    _, t_k, kdim = k_ref.shape
    _, _, vdim = v_ref.shape
    outdim = n_heads * head_dim
    cd = compute_dtype
    exact = jnp.dtype(cd) == jnp.dtype(jnp.float32)

    # ---- Input projections: fold (batch, time) rows into one tall MXU matmul
    # per projection (compute-dtype operands, f32 accumulation, f32 bias).
    # The 1/sqrt(head_dim) score scale is already folded into wq/bq by the
    # wrapper, so there is no per-head scale multiply below.
    q2 = q_ref[...].reshape(b_blk * t_q, qdim).astype(cd)
    k2 = k_ref[...].reshape(b_blk * t_k, kdim).astype(cd)
    v2 = v_ref[...].reshape(b_blk * t_k, vdim).astype(cd)

    q = jnp.dot(q2, wq_ref[...], preferred_element_type=jnp.float32) + bq_ref[...]
    k = jnp.dot(k2, wk_ref[...], preferred_element_type=jnp.float32) + bk_ref[...]
    v = jnp.dot(v2, wv_ref[...], preferred_element_type=jnp.float32) + bv_ref[...]

    # Cast once (hoisted out of the head loop) for the attention matmuls.
    q_c = q.astype(cd).reshape(b_blk, t_q, outdim)
    k_c = k.astype(cd).reshape(b_blk, t_k, outdim)
    v_c = v.astype(cd).reshape(b_blk, t_k, outdim)

    # ---- Per-head scaled dot-product attention, batched over the batch block
    # via leading-batch-dim einsums (no explicit K transpose).  Head outputs
    # stay in vregs and are merged with one lane-dense concatenate instead of
    # masked head_dim-wide stores into a VMEM scratch accumulator.
    # n_heads is small and static, so a static unroll is acceptable here.
    head_outs = []
    for h in range(n_heads):
        lo = h * head_dim
        hi = lo + head_dim
        qh = q_c[:, :, lo:hi]                            # (b, T_q, hd)
        kh = k_c[:, :, lo:hi]                            # (b, T_k, hd)
        vh = v_c[:, :, lo:hi]                            # (b, T_k, hd)
        s = jnp.einsum('bqd,bkd->bqk', qh, kh,
                       preferred_element_type=jnp.float32)
        s = s - jnp.max(s, axis=-1, keepdims=True)
        p = jnp.exp(s)
        # softmax denominator -> EUP reciprocal (exact on the f32 check path).
        p = p * pl.reciprocal(jnp.sum(p, axis=-1, keepdims=True),
                              approx=not exact)
        head_outs.append(
            jnp.einsum('bqk,bkd->bqd', p.astype(cd), vh,
                       preferred_element_type=jnp.float32))
    h_all = jnp.concatenate(head_outs, axis=-1)          # (b, T_q, outdim) f32

    # ---- Residual add + TF-style LayerNorm (epsilon inside the sqrt), f32.
    # Re-read the raw query here instead of holding it live across the heads;
    # one-pass variance halves the cross-lane reductions.
    x = q_ref[...].astype(jnp.float32) + h_all
    u = jnp.mean(x, axis=-1, keepdims=True)
    var = jnp.maximum(jnp.mean(x * x, axis=-1, keepdims=True) - u * u, 0.0)
    xn = (x - u) * lax.rsqrt(var + eps)
    out_ref[...] = (gamma_ref[...] * xn + beta_ref[...]).astype(out_ref.dtype)


def _choose_batch_block(n, t_q, t_k, qdim, kdim, vdim, outdim,
                        target_rows=256, vmem_budget_bytes=24 << 20):
    """Pick a batch block:
       * ~target_rows folded MXU rows per step (raise to 512 on v6e),
       * at least 2 grid steps so both v7x TensorCores get work,
       * an in-kernel footprint (streams + projections + score tiles) that
         stays within a conservative VMEM budget."""
    # TODO(synk): pad the time axis to a multiple of 8 (and mask padded keys)
    # instead of falling back to b=1 for ragged T.
    if t_q % 8 != 0 or t_k % 8 != 0:
        return 1
    b = max(1, min(n, target_rows // max(t_q, 1)))
    if n >= 2:
        b = min(b, max(1, n // 2))     # keep >= 2 grid steps (v7x has 2 TCs)
    while n % b:
        b -= 1

    def footprint(bb):
        # double-buffered q/k/v/out streams + q/k/v projections (+ casts)
        # + one head's score/prob tiles, counted at 4 bytes each.
        streams = 2 * 4 * bb * (t_q * qdim + t_k * kdim + t_k * vdim
                                + t_q * outdim)
        proj = 2 * 4 * bb * (t_q + 2 * t_k) * outdim
        score = 2 * 4 * bb * t_q * t_k
        return streams + proj + score

    while b > 1 and footprint(b) > vmem_budget_bytes:
        b = max(1, b // 2)
        while n % b:
            b -= 1
    return b


def multi_head_attention(query, key, value, params, *, n_heads, eps=1e-12,
                         compute_dtype=jnp.bfloat16, stream_dtype=None,
                         batch_block=None, target_rows=256):
    """query: (N, T_q, qdim), key: (N, T_k, kdim), value: (N, T_k, vdim).

    params = (wq, bq, wk, bk, wv, bv, gamma, beta); weights are (in, out)."""
    N, T_q, qdim = query.shape
    _, T_k, kdim = key.shape
    _, _, vdim = value.shape
    wq, bq, wk, bk, wv, bv, gamma, beta = params
    outdim = wq.shape[1]
    assert outdim % n_heads == 0
    head_dim = outdim // n_heads
    # The residual add in the module requires qdim == outdim.
    assert qdim == outdim

    if batch_block is None:
        batch_block = _choose_batch_block(N, T_q, T_k, qdim, kdim, vdim,
                                          outdim, target_rows=target_rows)
    b_blk = batch_block
    assert N % b_blk == 0
    grid = (N // b_blk,)

    kernel = functools.partial(_mha_kernel, n_heads=n_heads, head_dim=head_dim,
                               eps=eps, compute_dtype=compute_dtype)

    # Fold the 1/sqrt(head_dim) attention scale into the Q projection:
    # ((xW + b) * s) @ k^T == (x(Ws) + b*s) @ k^T.  Weights cast once to the
    # compute dtype (halves their DMA bytes on the bf16 path); biases and
    # LayerNorm params stay f32 as 2-D (1, outdim) VMEM tiles.
    scale = 1.0 / math.sqrt(float(head_dim))
    wq_c = (wq.astype(jnp.float32) * scale).astype(compute_dtype)
    wk_c = wk.astype(compute_dtype)
    wv_c = wv.astype(compute_dtype)
    bq2 = (bq.astype(jnp.float32) * scale).reshape(1, outdim)
    bk2 = bk.reshape(1, outdim).astype(jnp.float32)
    bv2 = bv.reshape(1, outdim).astype(jnp.float32)
    gamma2 = gamma.reshape(1, outdim).astype(jnp.float32)
    beta2 = beta.reshape(1, outdim).astype(jnp.float32)

    # Optionally stream q/k/v as bf16 (mem-bound v5e win); reduction math in
    # the kernel stays f32.
    if stream_dtype is not None:
        query = query.astype(stream_dtype)
        key = key.astype(stream_dtype)
        value = value.astype(stream_dtype)

    # Constant-index blocks (weights etc.) are not re-DMAed across grid steps.
    # (For very large weights on v7x, pipeline_mode=pl.Buffered(1) on these
    # specs would also reclaim the second VMEM buffer.)
    full2d = lambda shape: pl.BlockSpec(shape, lambda b: (0, 0))

    out = pl.pallas_call(
        kernel,
        out_shape=jax.ShapeDtypeStruct((N, T_q, outdim), jnp.float32),
        grid_spec=pltpu.PrefetchScalarGridSpec(
            num_scalar_prefetch=0,
            grid=grid,
            in_specs=[
                pl.BlockSpec((b_blk, T_q, qdim), lambda b: (b, 0, 0)),  # query
                pl.BlockSpec((b_blk, T_k, kdim), lambda b: (b, 0, 0)),  # key
                pl.BlockSpec((b_blk, T_k, vdim), lambda b: (b, 0, 0)),  # value
                full2d((qdim, outdim)),   # wq (pre-scaled)
                full2d((1, outdim)),      # bq (pre-scaled)
                full2d((kdim, outdim)),   # wk
                full2d((1, outdim)),      # bk
                full2d((vdim, outdim)),   # wv
                full2d((1, outdim)),      # bv
                full2d((1, outdim)),      # gamma
                full2d((1, outdim)),      # beta
            ],
            out_specs=pl.BlockSpec((b_blk, T_q, outdim), lambda b: (b, 0, 0)),
        ),
        compiler_params=pltpu.CompilerParams(
            dimension_semantics=("parallel",),
            vmem_limit_bytes=48 * 1024 * 1024),
    )(query, key, value, wq_c, bq2, wk_c, bk2, wv_c, bv2, gamma2, beta2)
    return out


def _reference(query, key, value, params, *, n_heads, eps=1e-12):
    """Pure-JAX reference mirroring the PyTorch forward (eval mode, f32)."""
    wq, bq, wk, bk, wv, bv, gamma, beta = params
    N, T_q, _ = query.shape
    outdim = wq.shape[1]
    hd = outdim // n_heads

    q = query @ wq + bq
    k = key @ wk + bk
    v = value @ wv + bv
    q = q.reshape(N, T_q, n_heads, hd).transpose(0, 2, 1, 3)
    k = k.reshape(N, -1, n_heads, hd).transpose(0, 2, 1, 3)
    v = v.reshape(N, -1, n_heads, hd).transpose(0, 2, 1, 3)
    scores = jnp.einsum("nhqd,nhkd->nhqk", q, k) / jnp.sqrt(jnp.float32(hd))
    scores = jax.nn.softmax(scores, axis=-1)
    h = jnp.einsum("nhqk,nhkd->nhqd", scores, v)
    h = h.transpose(0, 2, 1, 3).reshape(N, T_q, outdim)
    x = query + h
    u = jnp.mean(x, axis=-1, keepdims=True)
    s = jnp.mean((x - u) ** 2, axis=-1, keepdims=True)
    xn = (x - u) / jnp.sqrt(s + eps)
    return gamma * xn + beta


if __name__ == "__main__":
    # cfg: n_heads=4, qdim=kdim=vdim=outdim=dim=32 (residual requires qdim==outdim)
    N, T_q, T_k = 2, 8, 8
    qdim = kdim = vdim = outdim = dim = 32
    n_heads = 4

    key0 = jax.random.PRNGKey(0)
    ks = jax.random.split(key0, 10)
    query = jax.random.normal(ks[0], (N, T_q, qdim), dtype=jnp.float32)
    key_in = jax.random.normal(ks[1], (N, T_k, kdim), dtype=jnp.float32)
    value = jax.random.normal(ks[2], (N, T_k, vdim), dtype=jnp.float32)

    # Deterministic parameter init (Linear weights stored as (in, out)).
    def lin_init(k, fan_in, fan_out):
        bound = 1.0 / math.sqrt(fan_in)
        kw, kb = jax.random.split(k)
        w = jax.random.uniform(kw, (fan_in, fan_out), minval=-bound, maxval=bound,
                               dtype=jnp.float32)
        b = jax.random.uniform(kb, (fan_out,), minval=-bound, maxval=bound,
                               dtype=jnp.float32)
        return w, b

    wq, bq = lin_init(ks[3], qdim, outdim)
    wk, bk = lin_init(ks[4], kdim, outdim)
    wv, bv = lin_init(ks[5], vdim, outdim)
    gamma = jnp.ones((dim,), dtype=jnp.float32)
    beta = jnp.zeros((dim,), dtype=jnp.float32)
    params = (wq, bq, wk, bk, wv, bv, gamma, beta)

    ref = _reference(query, key_in, value, params, n_heads=n_heads)

    # f32 MXU path: tight check against the PyTorch-style reference.
    out_f32 = multi_head_attention(query, key_in, value, params,
                                   n_heads=n_heads, compute_dtype=jnp.float32)
    out_f32 = jax.block_until_ready(out_f32)
    assert out_f32.shape == (N, T_q, outdim)
    assert jnp.allclose(out_f32, ref, atol=5e-3, rtol=5e-3), "f32 mismatch vs reference"

    # bf16 MXU path (default / fast): looser tolerance for bf16 matmul operands.
    out_bf16 = multi_head_attention(query, key_in, value, params, n_heads=n_heads)
    out_bf16 = jax.block_until_ready(out_bf16)
    assert out_bf16.shape == (N, T_q, outdim)
    assert jnp.allclose(out_bf16, ref, atol=5e-2, rtol=5e-2), "bf16 mismatch vs reference"

    # bf16 MXU + bf16-streamed inputs (v5e mem-bound configuration).
    out_stream = multi_head_attention(query, key_in, value, params,
                                      n_heads=n_heads,
                                      stream_dtype=jnp.bfloat16)
    out_stream = jax.block_until_ready(out_stream)
    assert out_stream.shape == (N, T_q, outdim)
    assert jnp.allclose(out_stream, ref, atol=1e-1, rtol=1e-1), \
        "bf16-stream mismatch vs reference"

    print("KERNEL_OK")
</pallas_src>

<mosaic_0001>
module attributes {stable_mosaic.version = 11 : i64} {
  func.func @_mha_kernel(%arg0: i32, %arg1: memref<1x8x32xf32, #tpu.memory_space<vmem>>, %arg2: memref<1x8x32xf32, #tpu.memory_space<vmem>>, %arg3: memref<1x8x32xf32, #tpu.memory_space<vmem>>, %arg4: memref<32x32xf32, #tpu.memory_space<vmem>>, %arg5: memref<1x32xf32, #tpu.memory_space<vmem>>, %arg6: memref<32x32xf32, #tpu.memory_space<vmem>>, %arg7: memref<1x32xf32, #tpu.memory_space<vmem>>, %arg8: memref<32x32xf32, #tpu.memory_space<vmem>>, %arg9: memref<1x32xf32, #tpu.memory_space<vmem>>, %arg10: memref<1x32xf32, #tpu.memory_space<vmem>>, %arg11: memref<1x32xf32, #tpu.memory_space<vmem>>, %arg12: memref<1x8x32xf32, #tpu.memory_space<vmem>>) attributes {dimension_semantics = [#tpu.dimension_semantics<parallel>], iteration_bounds = array<i64: 2>, scalar_prefetch = 0 : i64, scratch_operands = 0 : i64, tpu.core_type = #tpu.core_type<tc>, window_params = [{transform_indices = @transform_0, window_bounds = array<i64: 1, 8, 32>}, {transform_indices = @transform_1, window_bounds = array<i64: 1, 8, 32>}, {transform_indices = @transform_2, window_bounds = array<i64: 1, 8, 32>}, {pipeline_mode = #tpu.pipeline_mode<synchronous>, transform_indices = @transform_3, window_bounds = array<i64: 32, 32>}, {pipeline_mode = #tpu.pipeline_mode<synchronous>, transform_indices = @transform_4, window_bounds = array<i64: 1, 32>}, {pipeline_mode = #tpu.pipeline_mode<synchronous>, transform_indices = @transform_5, window_bounds = array<i64: 32, 32>}, {pipeline_mode = #tpu.pipeline_mode<synchronous>, transform_indices = @transform_6, window_bounds = array<i64: 1, 32>}, {pipeline_mode = #tpu.pipeline_mode<synchronous>, transform_indices = @transform_7, window_bounds = array<i64: 32, 32>}, {pipeline_mode = #tpu.pipeline_mode<synchronous>, transform_indices = @transform_8, window_bounds = array<i64: 1, 32>}, {pipeline_mode = #tpu.pipeline_mode<synchronous>, transform_indices = @transform_9, window_bounds = array<i64: 1, 32>}, {pipeline_mode = #tpu.pipeline_mode<synchronous>, transform_indices = @transform_10, window_bounds = array<i64: 1, 32>}, {transform_indices = @transform_11, window_bounds = array<i64: 1, 8, 32>}]} {
    %c0 = arith.constant 0 : index
    %c0_0 = arith.constant 0 : index
    %c0_1 = arith.constant 0 : index
    %0 = vector.load %arg1[%c0, %c0_0, %c0_1] : memref<1x8x32xf32, #tpu.memory_space<vmem>>, vector<1x8x32xf32>
    %1 = vector.shape_cast %0 : vector<1x8x32xf32> to vector<8x32xf32>
    %c0_2 = arith.constant 0 : index
    %c0_3 = arith.constant 0 : index
    %c0_4 = arith.constant 0 : index
    %2 = vector.load %arg2[%c0_2, %c0_3, %c0_4] : memref<1x8x32xf32, #tpu.memory_space<vmem>>, vector<1x8x32xf32>
    %3 = vector.shape_cast %2 : vector<1x8x32xf32> to vector<8x32xf32>
    %c0_5 = arith.constant 0 : index
    %c0_6 = arith.constant 0 : index
    %c0_7 = arith.constant 0 : index
    %4 = vector.load %arg3[%c0_5, %c0_6, %c0_7] : memref<1x8x32xf32, #tpu.memory_space<vmem>>, vector<1x8x32xf32>
    %5 = vector.shape_cast %4 : vector<1x8x32xf32> to vector<8x32xf32>
    %c0_8 = arith.constant 0 : index
    %c0_9 = arith.constant 0 : index
    %6 = vector.load %arg4[%c0_8, %c0_9] : memref<32x32xf32, #tpu.memory_space<vmem>>, vector<32x32xf32>
    %cst = arith.constant dense<0.000000e+00> : vector<8x32xf32>
    %7 = tpu.matmul %1, %6, %cst {dimension_numbers = #tpu.dot_dimension_numbers<[1], [0], [0], [1], [0, 0, 1, 1], [], []>} : vector<8x32xf32>, vector<32x32xf32>, vector<8x32xf32> -> vector<8x32xf32>
    %c0_10 = arith.constant 0 : index
    %c0_11 = arith.constant 0 : index
    %8 = vector.load %arg5[%c0_10, %c0_11] : memref<1x32xf32, #tpu.memory_space<vmem>>, vector<1x32xf32>
    %9 = vector.broadcast %8 : vector<1x32xf32> to vector<8x32xf32>
    %10 = arith.addf %7, %9 : vector<8x32xf32>
    %c0_12 = arith.constant 0 : index
    %c0_13 = arith.constant 0 : index
    %11 = vector.load %arg6[%c0_12, %c0_13] : memref<32x32xf32, #tpu.memory_space<vmem>>, vector<32x32xf32>
    %cst_14 = arith.constant dense<0.000000e+00> : vector<8x32xf32>
    %12 = tpu.matmul %3, %11, %cst_14 {dimension_numbers = #tpu.dot_dimension_numbers<[1], [0], [0], [1], [0, 0, 1, 1], [], []>} : vector<8x32xf32>, vector<32x32xf32>, vector<8x32xf32> -> vector<8x32xf32>
    %c0_15 = arith.constant 0 : index
    %c0_16 = arith.constant 0 : index
    %13 = vector.load %arg7[%c0_15, %c0_16] : memref<1x32xf32, #tpu.memory_space<vmem>>, vector<1x32xf32>
    %14 = vector.broadcast %13 : vector<1x32xf32> to vector<8x32xf32>
    %15 = arith.addf %12, %14 : vector<8x32xf32>
    %c0_17 = arith.constant 0 : index
    %c0_18 = arith.constant 0 : index
    %16 = vector.load %arg8[%c0_17, %c0_18] : memref<32x32xf32, #tpu.memory_space<vmem>>, vector<32x32xf32>
    %cst_19 = arith.constant dense<0.000000e+00> : vector<8x32xf32>
    %17 = tpu.matmul %5, %16, %cst_19 {dimension_numbers = #tpu.dot_dimension_numbers<[1], [0], [0], [1], [0, 0, 1, 1], [], []>} : vector<8x32xf32>, vector<32x32xf32>, vector<8x32xf32> -> vector<8x32xf32>
    %c0_20 = arith.constant 0 : index
    %c0_21 = arith.constant 0 : index
    %18 = vector.load %arg9[%c0_20, %c0_21] : memref<1x32xf32, #tpu.memory_space<vmem>>, vector<1x32xf32>
    %19 = vector.broadcast %18 : vector<1x32xf32> to vector<8x32xf32>
    %20 = arith.addf %17, %19 : vector<8x32xf32>
    %21 = vector.shape_cast %10 : vector<8x32xf32> to vector<1x8x32xf32>
    %22 = vector.shape_cast %15 : vector<8x32xf32> to vector<1x8x32xf32>
    %23 = vector.shape_cast %20 : vector<8x32xf32> to vector<1x8x32xf32>
    %24 = vector.extract_strided_slice %21 {offsets = [0, 0, 0], sizes = [1, 8, 8], strides = [1, 1, 1]} : vector<1x8x32xf32> to vector<1x8x8xf32>
    %25 = vector.extract_strided_slice %22 {offsets = [0, 0, 0], sizes = [1, 8, 8], strides = [1, 1, 1]} : vector<1x8x32xf32> to vector<1x8x8xf32>
    %26 = vector.extract_strided_slice %23 {offsets = [0, 0, 0], sizes = [1, 8, 8], strides = [1, 1, 1]} : vector<1x8x32xf32> to vector<1x8x8xf32>
    "tpu.trace_start"() <{level = 10 : i32, message = "bqd,bkd->bqk"}> : () -> ()
    %cst_22 = arith.constant dense<0.000000e+00> : vector<1x8x8xf32>
    %27 = tpu.matmul %24, %25, %cst_22 {dimension_numbers = #tpu.dot_dimension_numbers<[2], [2], [1], [1], [0, 0, 0, 1, 1, 1], [0], [0]>} : vector<1x8x8xf32>, vector<1x8x8xf32>, vector<1x8x8xf32> -> vector<1x8x8xf32>
    "tpu.trace_stop"() : () -> ()
    %cst_23 = arith.constant dense<0xFF800000> : vector<1x8xf32>
    %28 = vector.multi_reduction <maximumf>, %27, %cst_23 [2] : vector<1x8x8xf32> to vector<1x8xf32>
    %29 = vector.shape_cast %28 : vector<1x8xf32> to vector<1x8x1xf32>
    %30 = vector.broadcast %29 : vector<1x8x1xf32> to vector<1x8x8xf32>
    %31 = arith.subf %27, %30 : vector<1x8x8xf32>
    %32 = math.exp %31 : vector<1x8x8xf32>
    %cst_24 = arith.constant dense<0.000000e+00> : vector<1x8xf32>
    %33 = vector.multi_reduction <add>, %32, %cst_24 [2] : vector<1x8x8xf32> to vector<1x8xf32>
    %34 = vector.shape_cast %33 : vector<1x8xf32> to vector<1x8x1xf32>
    %35 = tpu.reciprocal %34 : vector<1x8x1xf32> -> vector<1x8x1xf32>
    %36 = vector.broadcast %35 : vector<1x8x1xf32> to vector<1x8x8xf32>
    %37 = arith.mulf %32, %36 : vector<1x8x8xf32>
    "tpu.trace_start"() <{level = 10 : i32, message = "bqk,bkd->bqd"}> : () -> ()
    %cst_25 = arith.constant dense<0.000000e+00> : vector<1x8x8xf32>
    %38 = tpu.matmul %37, %26, %cst_25 {dimension_numbers = #tpu.dot_dimension_numbers<[2], [1], [1], [2], [0, 0, 0, 1, 1, 2], [0], [0]>} : vector<1x8x8xf32>, vector<1x8x8xf32>, vector<1x8x8xf32> -> vector<1x8x8xf32>
    "tpu.trace_stop"() : () -> ()
    %39 = vector.extract_strided_slice %21 {offsets = [0, 0, 8], sizes = [1, 8, 8], strides = [1, 1, 1]} : vector<1x8x32xf32> to vector<1x8x8xf32>
    %40 = vector.extract_strided_slice %22 {offsets = [0, 0, 8], sizes = [1, 8, 8], strides = [1, 1, 1]} : vector<1x8x32xf32> to vector<1x8x8xf32>
    %41 = vector.extract_strided_slice %23 {offsets = [0, 0, 8], sizes = [1, 8, 8], strides = [1, 1, 1]} : vector<1x8x32xf32> to vector<1x8x8xf32>
    "tpu.trace_start"() <{level = 10 : i32, message = "bqd,bkd->bqk"}> : () -> ()
    %cst_26 = arith.constant dense<0.000000e+00> : vector<1x8x8xf32>
    %42 = tpu.matmul %39, %40, %cst_26 {dimension_numbers = #tpu.dot_dimension_numbers<[2], [2], [1], [1], [0, 0, 0, 1, 1, 1], [0], [0]>} : vector<1x8x8xf32>, vector<1x8x8xf32>, vector<1x8x8xf32> -> vector<1x8x8xf32>
    "tpu.trace_stop"() : () -> ()
    %cst_27 = arith.constant dense<0xFF800000> : vector<1x8xf32>
    %43 = vector.multi_reduction <maximumf>, %42, %cst_27 [2] : vector<1x8x8xf32> to vector<1x8xf32>
    %44 = vector.shape_cast %43 : vector<1x8xf32> to vector<1x8x1xf32>
    %45 = vector.broadcast %44 : vector<1x8x1xf32> to vector<1x8x8xf32>
    %46 = arith.subf %42, %45 : vector<1x8x8xf32>
    %47 = math.exp %46 : vector<1x8x8xf32>
    %cst_28 = arith.constant dense<0.000000e+00> : vector<1x8xf32>
    %48 = vector.multi_reduction <add>, %47, %cst_28 [2] : vector<1x8x8xf32> to vector<1x8xf32>
    %49 = vector.shape_cast %48 : vector<1x8xf32> to vector<1x8x1xf32>
    %50 = tpu.reciprocal %49 : vector<1x8x1xf32> -> vector<1x8x1xf32>
    %51 = vector.broadcast %50 : vector<1x8x1xf32> to vector<1x8x8xf32>
    %52 = arith.mulf %47, %51 : vector<1x8x8xf32>
    "tpu.trace_start"() <{level = 10 : i32, message = "bqk,bkd->bqd"}> : () -> ()
    %cst_29 = arith.constant dense<0.000000e+00> : vector<1x8x8xf32>
    %53 = tpu.matmul %52, %41, %cst_29 {dimension_numbers = #tpu.dot_dimension_numbers<[2], [1], [1], [2], [0, 0, 0, 1, 1, 2], [0], [0]>} : vector<1x8x8xf32>, vector<1x8x8xf32>, vector<1x8x8xf32> -> vector<1x8x8xf32>
    "tpu.trace_stop"() : () -> ()
    %54 = vector.extract_strided_slice %21 {offsets = [0, 0, 16], sizes = [1, 8, 8], strides = [1, 1, 1]} : vector<1x8x32xf32> to vector<1x8x8xf32>
    %55 = vector.extract_strided_slice %22 {offsets = [0, 0, 16], sizes = [1, 8, 8], strides = [1, 1, 1]} : vector<1x8x32xf32> to vector<1x8x8xf32>
    %56 = vector.extract_strided_slice %23 {offsets = [0, 0, 16], sizes = [1, 8, 8], strides = [1, 1, 1]} : vector<1x8x32xf32> to vector<1x8x8xf32>
    "tpu.trace_start"() <{level = 10 : i32, message = "bqd,bkd->bqk"}> : () -> ()
    %cst_30 = arith.constant dense<0.000000e+00> : vector<1x8x8xf32>
    %57 = tpu.matmul %54, %55, %cst_30 {dimension_numbers = #tpu.dot_dimension_numbers<[2], [2], [1], [1], [0, 0, 0, 1, 1, 1], [0], [0]>} : vector<1x8x8xf32>, vector<1x8x8xf32>, vector<1x8x8xf32> -> vector<1x8x8xf32>
    "tpu.trace_stop"() : () -> ()
    %cst_31 = arith.constant dense<0xFF800000> : vector<1x8xf32>
    %58 = vector.multi_reduction <maximumf>, %57, %cst_31 [2] : vector<1x8x8xf32> to vector<1x8xf32>
    %59 = vector.shape_cast %58 : vector<1x8xf32> to vector<1x8x1xf32>
    %60 = vector.broadcast %59 : vector<1x8x1xf32> to vector<1x8x8xf32>
    %61 = arith.subf %57, %60 : vector<1x8x8xf32>
    %62 = math.exp %61 : vector<1x8x8xf32>
    %cst_32 = arith.constant dense<0.000000e+00> : vector<1x8xf32>
    %63 = vector.multi_reduction <add>, %62, %cst_32 [2] : vector<1x8x8xf32> to vector<1x8xf32>
    %64 = vector.shape_cast %63 : vector<1x8xf32> to vector<1x8x1xf32>
    %65 = tpu.reciprocal %64 : vector<1x8x1xf32> -> vector<1x8x1xf32>
    %66 = vector.broadcast %65 : vector<1x8x1xf32> to vector<1x8x8xf32>
    %67 = arith.mulf %62, %66 : vector<1x8x8xf32>
    "tpu.trace_start"() <{level = 10 : i32, message = "bqk,bkd->bqd"}> : () -> ()
    %cst_33 = arith.constant dense<0.000000e+00> : vector<1x8x8xf32>
    %68 = tpu.matmul %67, %56, %cst_33 {dimension_numbers = #tpu.dot_dimension_numbers<[2], [1], [1], [2], [0, 0, 0, 1, 1, 2], [0], [0]>} : vector<1x8x8xf32>, vector<1x8x8xf32>, vector<1x8x8xf32> -> vector<1x8x8xf32>
    "tpu.trace_stop"() : () -> ()
    %69 = vector.extract_strided_slice %21 {offsets = [0, 0, 24], sizes = [1, 8, 8], strides = [1, 1, 1]} : vector<1x8x32xf32> to vector<1x8x8xf32>
    %70 = vector.extract_strided_slice %22 {offsets = [0, 0, 24], sizes = [1, 8, 8], strides = [1, 1, 1]} : vector<1x8x32xf32> to vector<1x8x8xf32>
    %71 = vector.extract_strided_slice %23 {offsets = [0, 0, 24], sizes = [1, 8, 8], strides = [1, 1, 1]} : vector<1x8x32xf32> to vector<1x8x8xf32>
    "tpu.trace_start"() <{level = 10 : i32, message = "bqd,bkd->bqk"}> : () -> ()
    %cst_34 = arith.constant dense<0.000000e+00> : vector<1x8x8xf32>
    %72 = tpu.matmul %69, %70, %cst_34 {dimension_numbers = #tpu.dot_dimension_numbers<[2], [2], [1], [1], [0, 0, 0, 1, 1, 1], [0], [0]>} : vector<1x8x8xf32>, vector<1x8x8xf32>, vector<1x8x8xf32> -> vector<1x8x8xf32>
    "tpu.trace_stop"() : () -> ()
    %cst_35 = arith.constant dense<0xFF800000> : vector<1x8xf32>
    %73 = vector.multi_reduction <maximumf>, %72, %cst_35 [2] : vector<1x8x8xf32> to vector<1x8xf32>
    %74 = vector.shape_cast %73 : vector<1x8xf32> to vector<1x8x1xf32>
    %75 = vector.broadcast %74 : vector<1x8x1xf32> to vector<1x8x8xf32>
    %76 = arith.subf %72, %75 : vector<1x8x8xf32>
    %77 = math.exp %76 : vector<1x8x8xf32>
    %cst_36 = arith.constant dense<0.000000e+00> : vector<1x8xf32>
    %78 = vector.multi_reduction <add>, %77, %cst_36 [2] : vector<1x8x8xf32> to vector<1x8xf32>
    %79 = vector.shape_cast %78 : vector<1x8xf32> to vector<1x8x1xf32>
    %80 = tpu.reciprocal %79 : vector<1x8x1xf32> -> vector<1x8x1xf32>
    %81 = vector.broadcast %80 : vector<1x8x1xf32> to vector<1x8x8xf32>
    %82 = arith.mulf %77, %81 : vector<1x8x8xf32>
    "tpu.trace_start"() <{level = 10 : i32, message = "bqk,bkd->bqd"}> : () -> ()
    %cst_37 = arith.constant dense<0.000000e+00> : vector<1x8x8xf32>
    %83 = tpu.matmul %82, %71, %cst_37 {dimension_numbers = #tpu.dot_dimension_numbers<[2], [1], [1], [2], [0, 0, 0, 1, 1, 2], [0], [0]>} : vector<1x8x8xf32>, vector<1x8x8xf32>, vector<1x8x8xf32> -> vector<1x8x8xf32>
    "tpu.trace_stop"() : () -> ()
    %84 = tpu.concatenate %38, %53, %68, %83 in 2 : vector<1x8x8xf32>, vector<1x8x8xf32>, vector<1x8x8xf32>, vector<1x8x8xf32> -> vector<1x8x32xf32>
    %c0_38 = arith.constant 0 : index
    %c0_39 = arith.constant 0 : index
    %c0_40 = arith.constant 0 : index
    %85 = vector.load %arg1[%c0_38, %c0_39, %c0_40] : memref<1x8x32xf32, #tpu.memory_space<vmem>>, vector<1x8x32xf32>
    %86 = arith.addf %85, %84 : vector<1x8x32xf32>
    %cst_41 = arith.constant dense<0.000000e+00> : vector<1x8xf32>
    %87 = vector.multi_reduction <add>, %86, %cst_41 [2] : vector<1x8x32xf32> to vector<1x8xf32>
    %88 = vector.shape_cast %87 : vector<1x8xf32> to vector<1x8x1xf32>
    %cst_42 = arith.constant 3.200000e+01 : f32
    %89 = vector.broadcast %cst_42 : f32 to vector<1x8x1xf32>
    %90 = arith.divf %88, %89 : vector<1x8x1xf32>
    %91 = arith.mulf %86, %86 : vector<1x8x32xf32>
    %cst_43 = arith.constant dense<0.000000e+00> : vector<1x8xf32>
    %92 = vector.multi_reduction <add>, %91, %cst_43 [2] : vector<1x8x32xf32> to vector<1x8xf32>
    %93 = vector.shape_cast %92 : vector<1x8xf32> to vector<1x8x1xf32>
    %cst_44 = arith.constant 3.200000e+01 : f32
    %94 = vector.broadcast %cst_44 : f32 to vector<1x8x1xf32>
    %95 = arith.divf %93, %94 : vector<1x8x1xf32>
    %96 = arith.mulf %90, %90 : vector<1x8x1xf32>
    %97 = arith.subf %95, %96 : vector<1x8x1xf32>
    %cst_45 = arith.constant 0.000000e+00 : f32
    %98 = vector.broadcast %cst_45 : f32 to vector<1x8x1xf32>
    %99 = arith.maximumf %97, %98 : vector<1x8x1xf32>
    %100 = vector.broadcast %90 : vector<1x8x1xf32> to vector<1x8x32xf32>
    %101 = arith.subf %86, %100 : vector<1x8x32xf32>
    %cst_46 = arith.constant 9.99999996E-13 : f32
    %102 = vector.broadcast %cst_46 : f32 to vector<1x8x1xf32>
    %103 = arith.addf %99, %102 : vector<1x8x1xf32>
    %104 = math.rsqrt %103 : vector<1x8x1xf32>
    %105 = vector.broadcast %104 : vector<1x8x1xf32> to vector<1x8x32xf32>
    %106 = arith.mulf %101, %105 : vector<1x8x32xf32>
    %c0_47 = arith.constant 0 : index
    %c0_48 = arith.constant 0 : index
    %107 = vector.load %arg10[%c0_47, %c0_48] : memref<1x32xf32, #tpu.memory_space<vmem>>, vector<1x32xf32>
    %108 = vector.shape_cast %107 : vector<1x32xf32> to vector<1x1x32xf32>
    %109 = vector.broadcast %108 : vector<1x1x32xf32> to vector<1x8x32xf32>
    %110 = arith.mulf %109, %106 : vector<1x8x32xf32>
    %c0_49 = arith.constant 0 : index
    %c0_50 = arith.constant 0 : index
    %111 = vector.load %arg11[%c0_49, %c0_50] : memref<1x32xf32, #tpu.memory_space<vmem>>, vector<1x32xf32>
    %112 = vector.shape_cast %111 : vector<1x32xf32> to vector<1x1x32xf32>
    %113 = vector.broadcast %112 : vector<1x1x32xf32> to vector<1x8x32xf32>
    %114 = arith.addf %110, %113 : vector<1x8x32xf32>
    %c0_51 = arith.constant 0 : index
    %c0_52 = arith.constant 0 : index
    %c0_53 = arith.constant 0 : index
    %115 = vector.load %arg12[%c0_51, %c0_52, %c0_53] : memref<1x8x32xf32, #tpu.memory_space<vmem>>, vector<1x8x32xf32>
    tpu.vector_store %arg12[%c0_51, %c0_52, %c0_53], %114 {strides = array<i32>} : memref<1x8x32xf32, #tpu.memory_space<vmem>>, vector<1x8x32xf32>,
    return
  }
  func.func @transform_0(%arg0: i32) -> (i32, i32, i32) {
    %c0_i32 = arith.constant 0 : i32
    %c0_i32_0 = arith.constant 0 : i32
    %c0_i32_1 = arith.constant 0 : i32
    return %arg0, %c0_i32, %c0_i32_0 : i32, i32, i32
  }
  func.func @transform_1(%arg0: i32) -> (i32, i32, i32) {
    %c0_i32 = arith.constant 0 : i32
    %c0_i32_0 = arith.constant 0 : i32
    %c0_i32_1 = arith.constant 0 : i32
    return %arg0, %c0_i32, %c0_i32_0 : i32, i32, i32
  }
  func.func @transform_2(%arg0: i32) -> (i32, i32, i32) {
    %c0_i32 = arith.constant 0 : i32
    %c0_i32_0 = arith.constant 0 : i32
    %c0_i32_1 = arith.constant 0 : i32
    return %arg0, %c0_i32, %c0_i32_0 : i32, i32, i32
  }
  func.func @transform_3(%arg0: i32) -> (i32, i32) {
    %c0_i32 = arith.constant 0 : i32
    %c0_i32_0 = arith.constant 0 : i32
    %c0_i32_1 = arith.constant 0 : i32
    return %c0_i32, %c0_i32_0 : i32, i32
  }
  func.func @transform_4(%arg0: i32) -> (i32, i32) {
    %c0_i32 = arith.constant 0 : i32
    %c0_i32_0 = arith.constant 0 : i32
    %c0_i32_1 = arith.constant 0 : i32
    return %c0_i32, %c0_i32_0 : i32, i32
  }
  func.func @transform_5(%arg0: i32) -> (i32, i32) {
    %c0_i32 = arith.constant 0 : i32
    %c0_i32_0 = arith.constant 0 : i32
    %c0_i32_1 = arith.constant 0 : i32
    return %c0_i32, %c0_i32_0 : i32, i32
  }
  func.func @transform_6(%arg0: i32) -> (i32, i32) {
    %c0_i32 = arith.constant 0 : i32
    %c0_i32_0 = arith.constant 0 : i32
    %c0_i32_1 = arith.constant 0 : i32
    return %c0_i32, %c0_i32_0 : i32, i32
  }
  func.func @transform_7(%arg0: i32) -> (i32, i32) {
    %c0_i32 = arith.constant 0 : i32
    %c0_i32_0 = arith.constant 0 : i32
    %c0_i32_1 = arith.constant 0 : i32
    return %c0_i32, %c0_i32_0 : i32, i32
  }
  func.func @transform_8(%arg0: i32) -> (i32, i32) {
    %c0_i32 = arith.constant 0 : i32
    %c0_i32_0 = arith.constant 0 : i32
    %c0_i32_1 = arith.constant 0 : i32
    return %c0_i32, %c0_i32_0 : i32, i32
  }
  func.func @transform_9(%arg0: i32) -> (i32, i32) {
    %c0_i32 = arith.constant 0 : i32
    %c0_i32_0 = arith.constant 0 : i32
    %c0_i32_1 = arith.constant 0 : i32
    return %c0_i32, %c0_i32_0 : i32, i32
  }
  func.func @transform_10(%arg0: i32) -> (i32, i32) {
    %c0_i32 = arith.constant 0 : i32
    %c0_i32_0 = arith.constant 0 : i32
    %c0_i32_1 = arith.constant 0 : i32
    return %c0_i32, %c0_i32_0 : i32, i32
  }
  func.func @transform_11(%arg0: i32) -> (i32, i32, i32) {
    %c0_i32 = arith.constant 0 : i32
    %c0_i32_0 = arith.constant 0 : i32
    %c0_i32_1 = arith.constant 0 : i32
    return %arg0, %c0_i32, %c0_i32_0 : i32, i32, i32
  }
}

</mosaic_0001>

<llo_original>
// kernel: tpu_custom_call.1
$region0: #{tpu_custom_call.1}
  #allocation0 [shape = 'u32[]', space=smem, size = 0x4, offset = 0x4, fixed_abs, tag = 'smem constant byte address 0x4 - core index']
  #allocation1 [shape = 'u32[144,128]{1,0:T(1,128)}', space=vmem, size = 0x12000, scoped, tag = 'internal scratch']
  %s0 = inlined_call_operand.hbm [shape: f32[2,8,32], index: 0, kind: input, shape index: {}]
  %s1 = inlined_call_operand.hbm [shape: f32[2,8,32], index: 1, kind: input, shape index: {}]
  %s2 = inlined_call_operand.hbm [shape: f32[2,8,32], index: 2, kind: input, shape index: {}]
  %s3 = inlined_call_operand.hbm [shape: f32[32,32], index: 3, kind: input, shape index: {}]
  %s4 = inlined_call_operand.vmem [shape: f32[1,32], index: 4, kind: input, shape index: {}]
  %s5 = inlined_call_operand.hbm [shape: f32[32,32], index: 5, kind: input, shape index: {}]
  %s6 = inlined_call_operand.vmem [shape: f32[1,32], index: 6, kind: input, shape index: {}]
  %s7 = inlined_call_operand.hbm [shape: f32[32,32], index: 7, kind: input, shape index: {}]
  %s8 = inlined_call_operand.vmem [shape: f32[1,32], index: 8, kind: input, shape index: {}]
  %s9 = inlined_call_operand.vmem [shape: f32[1,32], index: 9, kind: input, shape index: {}]
  %s10 = inlined_call_operand.vmem [shape: f32[1,32], index: 10, kind: input, shape index: {}]
  %s11 = inlined_call_operand.hbm [shape: f32[2,8,32], index: 11, kind: output, shape index: {}]
  %s12 = sld [smem:[#allocation0]]
  $region101: #{tpu_custom_call.1} parent=0
    _
  %s14 = ssub.s32 1, %s12
  %s15 = scalar_select 0, %s14, %s12
  $region1: #{tpu_custom_call.1} parent=0
    #allocation2 [shape = 'u8[8192]{0}', space=vmem, size = 0x2000, scoped, tag = 'input window, operand 0']
    #allocation3 [shape = 's32[2]{0}', space=sflag, size = 0x8, scoped, tag = 'scoped memory for tpu_custom_call.1']
    #allocation4 [shape = 's32[2]{0}', space=sflag, size = 0x8, scoped, tag = 'scoped memory for tpu_custom_call.1']
    #allocation5 [shape = 'u8[8192]{0}', space=vmem, size = 0x2000, scoped, tag = 'input window, operand 1']
    #allocation6 [shape = 's32[2]{0}', space=sflag, size = 0x8, scoped, tag = 'scoped memory for tpu_custom_call.1']
    #allocation7 [shape = 'u8[8192]{0}', space=vmem, size = 0x2000, scoped, tag = 'input window, operand 2']
    #allocation8 [shape = 'u8[16384]{0}', space=vmem, size = 0x4000, scoped, tag = 'input window, operand 3, single buffered']
    #allocation9 [shape = 's32[1]{0}', space=sflag, size = 0x4, scoped, tag = 'scoped memory for tpu_custom_call.1']
    #allocation10 [shape = 'u8[16384]{0}', space=vmem, size = 0x4000, scoped, tag = 'input window, operand 5, single buffered']
    #allocation11 [shape = 'u8[16384]{0}', space=vmem, size = 0x4000, scoped, tag = 'input window, operand 7, single buffered']
    #allocation12 [shape = 's32[1]{0}', space=sflag, size = 0x4, scoped, tag = 'scoped memory for tpu_custom_call.1']
    #allocation13 [shape = 'u8[8192]{0}', space=vmem, size = 0x2000, scoped, tag = 'output window, operand 0']
    %16 = vsyncpa [#allocation3], 0
    %s17 = scalar_lea.sflag [#allocation3], 1
    %18 = vsyncpa %s17, 0
    %19 = vsyncpa [#allocation6], 0
    %s20 = scalar_lea.sflag [#allocation6], 1
    %21 = vsyncpa %s20, 0
    %22 = vsyncpa [#allocation9], 0
    %23 = vsyncpa [#allocation12], 0
    %24 = vsyncpa [#allocation4], 0
    %s25 = scalar_lea.sflag [#allocation4], 1
    %26 = vsyncpa %s25, 0
    loop: start=0, step=1, limit=4
    $region2: #{tpu_custom_call.1} parent=1 // loop_pre_header
      _
    $region3: #{tpu_custom_call.1} parent=1 // loop_header
      %s28 = sphi 0, %s32
      %p29 = scmp.ge.s32.totalorder %s28, 4
      %s38 = sphi 0, %s40
      %s41 = sphi 0, %s38
      %s42 = sphi 0, %s41
      %s58 = sphi 0, %s42
      %s64 = sphi 0, %s66
      %s67 = sphi 0, %s64
      %s68 = sphi 0, %s67
      %s84 = sphi 0, %s68
      %s90 = sphi 0, %s92
      %s93 = sphi 0, %s90
      %s94 = sphi 0, %s93
      %s110 = sphi 0, %s94
      %s114 = sphi 0, %s114
      %s116 = sphi 0, %s114
      %s117 = sphi 0, %s116
      %s131 = sphi 0, %s117
      %s135 = sphi 0, %s135
      %s137 = sphi 0, %s135
      %s138 = sphi 0, %s137
      %s152 = sphi 0, %s138
      %s156 = sphi 0, %s156
      %s158 = sphi 0, %s156
      %s159 = sphi 0, %s158
      %s173 = sphi 0, %s159
      %s177 = sphi 0, %s177
      %s179 = sphi 0, %s177
      %s180 = sphi 0, %s179
      %s194 = sphi 0, %s180
      %s198 = sphi 0, %s198
      %s200 = sphi 0, %s198
      %s201 = sphi 0, %s200
      %s215 = sphi 0, %s201
      %s219 = sphi 0, %s219
      %s221 = sphi 0, %s219
      %s222 = sphi 0, %s221
      %s236 = sphi 0, %s222
      %s240 = sphi 0, %s240
      %s242 = sphi 0, %s240
      %s243 = sphi 0, %s242
      %s257 = sphi 0, %s243
      %s261 = sphi 0, %s261
      %s263 = sphi 0, %s261
      %s264 = sphi 0, %s263
      %s278 = sphi 0, %s264
      %s284 = sphi 0, %s286
      %s287 = sphi 0, %s284
      %s288 = sphi 0, %s287
      %s304 = sphi 0, %s288
    $region4: #{tpu_custom_call.1} parent=1 // loop_header_branch
      %31 = sbr.rel (%p29) target = $region8
    $region5: #{tpu_custom_call.1} parent=1 // loop_body
      %s33 = ssub.s32 %s28, 1
      %s34 = ssub.s32 %s28, 2
      %s35 = sadd.s32 %s28, 1
      %s36 = ssub.s32 %s28, %s35
      %p37 = scmp.eq.s32.totalorder %s36, 0
      %s39 = sadd.s32 %s38, 1
      %s40 = scalar_select %p37, %s38, %s39
      %p43 = pneg %p37
      %p44 = scmp.eq.s32.totalorder %s28, 1
      %p45 = por %p43, %p44
      %p46 = scmp.ne.s32.totalorder %s38, %s41
      %p47 = scmp.eq.s32.totalorder %s28, 0
      %p48 = por %p46, %p47
      %p49 = scmp.ne.s32.totalorder %s38, %s41
      %p50 = scmp.eq.s32.totalorder %s33, 1
      %p51 = por %p49, %p50
      %p52 = scmp.ne.s32.totalorder %s41, %s42
      %p53 = scmp.eq.s32.totalorder %s33, 0
      %p54 = por %p52, %p53
      %p55 = scmp.ne.s32.totalorder %s41, %s42
      %p56 = scmp.eq.s32.totalorder %s34, 1
      %p57 = por %p55, %p56
      %p59 = scmp.ne.s32.totalorder %s42, %s58
      %p60 = scmp.eq.s32.totalorder %s34, 0
      %p61 = por %p59, %p60
      %s62 = ssub.s32 %s28, %s35
      %p63 = scmp.eq.s32.totalorder %s62, 0
      %s65 = sadd.s32 %s64, 1
      %s66 = scalar_select %p63, %s64, %s65
      %p69 = pneg %p63
      %p70 = scmp.eq.s32.totalorder %s28, 1
      %p71 = por %p69, %p70
      %p72 = scmp.ne.s32.totalorder %s64, %s67
      %p73 = scmp.eq.s32.totalorder %s28, 0
      %p74 = por %p72, %p73
      %p75 = scmp.ne.s32.totalorder %s64, %s67
      %p76 = scmp.eq.s32.totalorder %s33, 1
      %p77 = por %p75, %p76
      %p78 = scmp.ne.s32.totalorder %s67, %s68
      %p79 = scmp.eq.s32.totalorder %s33, 0
      %p80 = por %p78, %p79
      %p81 = scmp.ne.s32.totalorder %s67, %s68
      %p82 = scmp.eq.s32.totalorder %s34, 1
      %p83 = por %p81, %p82
      %p85 = scmp.ne.s32.totalorder %s68, %s84
      %p86 = scmp.eq.s32.totalorder %s34, 0
      %p87 = por %p85, %p86
      %s88 = ssub.s32 %s28, %s35
      %p89 = scmp.eq.s32.totalorder %s88, 0
      %s91 = sadd.s32 %s90, 1
      %s92 = scalar_select %p89, %s90, %s91
      %p95 = pneg %p89
      %p96 = scmp.eq.s32.totalorder %s28, 1
      %p97 = por %p95, %p96
      %p98 = scmp.ne.s32.totalorder %s90, %s93
      %p99 = scmp.eq.s32.totalorder %s28, 0
      %p100 = por %p98, %p99
      %p101 = scmp.ne.s32.totalorder %s90, %s93
      %p102 = scmp.eq.s32.totalorder %s33, 1
      %p103 = por %p101, %p102
      %p104 = scmp.ne.s32.totalorder %s93, %s94
      %p105 = scmp.eq.s32.totalorder %s33, 0
      %p106 = por %p104, %p105
      %p107 = scmp.ne.s32.totalorder %s93, %s94
      %p108 = scmp.eq.s32.totalorder %s34, 1
      %p109 = por %p107, %p108
      %p111 = scmp.ne.s32.totalorder %s94, %s110
      %p112 = scmp.eq.s32.totalorder %s34, 0
      %p113 = por %p111, %p112
      %s115 = sadd.s32 %s114, 1
      %p118 = scmp.eq.s32.totalorder %s28, 1
      %p119 = scmp.ne.s32.totalorder %s114, %s116
      %p120 = scmp.eq.s32.totalorder %s28, 0
      %p121 = por %p119, %p120
      %p122 = scmp.ne.s32.totalorder %s114, %s116
      %p123 = scmp.eq.s32.totalorder %s33, 1
      %p124 = por %p122, %p123
      %p125 = scmp.ne.s32.totalorder %s116, %s117
      %p126 = scmp.eq.s32.totalorder %s33, 0
      %p127 = por %p125, %p126
      %p128 = scmp.ne.s32.totalorder %s116, %s117
      %p129 = scmp.eq.s32.totalorder %s34, 1
      %p130 = por %p128, %p129
      %p132 = scmp.ne.s32.totalorder %s117, %s131
      %p133 = scmp.eq.s32.totalorder %s34, 0
      %p134 = por %p132, %p133
      %s136 = sadd.s32 %s135, 1
      %p139 = scmp.eq.s32.totalorder %s28, 1
      %p140 = scmp.ne.s32.totalorder %s135, %s137
      %p141 = scmp.eq.s32.totalorder %s28, 0
      %p142 = por %p140, %p141
      %p143 = scmp.ne.s32.totalorder %s135, %s137
      %p144 = scmp.eq.s32.totalorder %s33, 1
      %p145 = por %p143, %p144
      %p146 = scmp.ne.s32.totalorder %s137, %s138
      %p147 = scmp.eq.s32.totalorder %s33, 0
      %p148 = por %p146, %p147
      %p149 = scmp.ne.s32.totalorder %s137, %s138
      %p150 = scmp.eq.s32.totalorder %s34, 1
      %p151 = por %p149, %p150
      %p153 = scmp.ne.s32.totalorder %s138, %s152
      %p154 = scmp.eq.s32.totalorder %s34, 0
      %p155 = por %p153, %p154
      %s157 = sadd.s32 %s156, 1
      %p160 = scmp.eq.s32.totalorder %s28, 1
      %p161 = scmp.ne.s32.totalorder %s156, %s158
      %p162 = scmp.eq.s32.totalorder %s28, 0
      %p163 = por %p161, %p162
      %p164 = scmp.ne.s32.totalorder %s156, %s158
      %p165 = scmp.eq.s32.totalorder %s33, 1
      %p166 = por %p164, %p165
      %p167 = scmp.ne.s32.totalorder %s158, %s159
      %p168 = scmp.eq.s32.totalorder %s33, 0
      %p169 = por %p167, %p168
      %p170 = scmp.ne.s32.totalorder %s158, %s159
      %p171 = scmp.eq.s32.totalorder %s34, 1
      %p172 = por %p170, %p171
      %p174 = scmp.ne.s32.totalorder %s159, %s173
      %p175 = scmp.eq.s32.totalorder %s34, 0
      %p176 = por %p174, %p175
      %s178 = sadd.s32 %s177, 1
      %p181 = scmp.eq.s32.totalorder %s28, 1
      %p182 = scmp.ne.s32.totalorder %s177, %s179
      %p183 = scmp.eq.s32.totalorder %s28, 0
      %p184 = por %p182, %p183
      %p185 = scmp.ne.s32.totalorder %s177, %s179
      %p186 = scmp.eq.s32.totalorder %s33, 1
      %p187 = por %p185, %p186
      %p188 = scmp.ne.s32.totalorder %s179, %s180
      %p189 = scmp.eq.s32.totalorder %s33, 0
      %p190 = por %p188, %p189
      %p191 = scmp.ne.s32.totalorder %s179, %s180
      %p192 = scmp.eq.s32.totalorder %s34, 1
      %p193 = por %p191, %p192
      %p195 = scmp.ne.s32.totalorder %s180, %s194
      %p196 = scmp.eq.s32.totalorder %s34, 0
      %p197 = por %p195, %p196
      %s199 = sadd.s32 %s198, 1
      %p202 = scmp.eq.s32.totalorder %s28, 1
      %p203 = scmp.ne.s32.totalorder %s198, %s200
      %p204 = scmp.eq.s32.totalorder %s28, 0
      %p205 = por %p203, %p204
      %p206 = scmp.ne.s32.totalorder %s198, %s200
      %p207 = scmp.eq.s32.totalorder %s33, 1
      %p208 = por %p206, %p207
      %p209 = scmp.ne.s32.totalorder %s200, %s201
      %p210 = scmp.eq.s32.totalorder %s33, 0
      %p211 = por %p209, %p210
      %p212 = scmp.ne.s32.totalorder %s200, %s201
      %p213 = scmp.eq.s32.totalorder %s34, 1
      %p214 = por %p212, %p213
      %p216 = scmp.ne.s32.totalorder %s201, %s215
      %p217 = scmp.eq.s32.totalorder %s34, 0
      %p218 = por %p216, %p217
      %s220 = sadd.s32 %s219, 1
      %p223 = scmp.eq.s32.totalorder %s28, 1
      %p224 = scmp.ne.s32.totalorder %s219, %s221
      %p225 = scmp.eq.s32.totalorder %s28, 0
      %p226 = por %p224, %p225
      %p227 = scmp.ne.s32.totalorder %s219, %s221
      %p228 = scmp.eq.s32.totalorder %s33, 1
      %p229 = por %p227, %p228
      %p230 = scmp.ne.s32.totalorder %s221, %s222
      %p231 = scmp.eq.s32.totalorder %s33, 0
      %p232 = por %p230, %p231
      %p233 = scmp.ne.s32.totalorder %s221, %s222
      %p234 = scmp.eq.s32.totalorder %s34, 1
      %p235 = por %p233, %p234
      %p237 = scmp.ne.s32.totalorder %s222, %s236
      %p238 = scmp.eq.s32.totalorder %s34, 0
      %p239 = por %p237, %p238
      %s241 = sadd.s32 %s240, 1
      %p244 = scmp.eq.s32.totalorder %s28, 1
      %p245 = scmp.ne.s32.totalorder %s240, %s242
      %p246 = scmp.eq.s32.totalorder %s28, 0
      %p247 = por %p245, %p246
      %p248 = scmp.ne.s32.totalorder %s240, %s242
      %p249 = scmp.eq.s32.totalorder %s33, 1
      %p250 = por %p248, %p249
      %p251 = scmp.ne.s32.totalorder %s242, %s243
      %p252 = scmp.eq.s32.totalorder %s33, 0
      %p253 = por %p251, %p252
      %p254 = scmp.ne.s32.totalorder %s242, %s243
      %p255 = scmp.eq.s32.totalorder %s34, 1
      %p256 = por %p254, %p255
      %p258 = scmp.ne.s32.totalorder %s243, %s257
      %p259 = scmp.eq.s32.totalorder %s34, 0
      %p260 = por %p258, %p259
      %s262 = sadd.s32 %s261, 1
      %p265 = scmp.eq.s32.totalorder %s28, 1
      %p266 = scmp.ne.s32.totalorder %s261, %s263
      %p267 = scmp.eq.s32.totalorder %s28, 0
      %p268 = por %p266, %p267
      %p269 = scmp.ne.s32.totalorder %s261, %s263
      %p270 = scmp.eq.s32.totalorder %s33, 1
      %p271 = por %p269, %p270
      %p272 = scmp.ne.s32.totalorder %s263, %s264
      %p273 = scmp.eq.s32.totalorder %s33, 0
      %p274 = por %p272, %p273
      %p275 = scmp.ne.s32.totalorder %s263, %s264
      %p276 = scmp.eq.s32.totalorder %s34, 1
      %p277 = por %p275, %p276
      %p279 = scmp.ne.s32.totalorder %s264, %s278
      %p280 = scmp.eq.s32.totalorder %s34, 0
      %p281 = por %p279, %p280
      %s282 = ssub.s32 %s28, %s35
      %p283 = scmp.eq.s32.totalorder %s282, 0
      %s285 = sadd.s32 %s284, 1
      %s286 = scalar_select %p283, %s284, %s285
      %p289 = pneg %p283
      %p290 = scmp.eq.s32.totalorder %s28, 1
      %p291 = por %p289, %p290
      %p292 = scmp.ne.s32.totalorder %s284, %s287
      %p293 = scmp.eq.s32.totalorder %s28, 0
      %p294 = por %p292, %p293
      %p295 = scmp.ne.s32.totalorder %s284, %s287
      %p296 = scmp.eq.s32.totalorder %s33, 1
      %p297 = por %p295, %p296
      %p298 = scmp.ne.s32.totalorder %s287, %s288
      %p299 = scmp.eq.s32.totalorder %s33, 0
      %p300 = por %p298, %p299
      %p301 = scmp.ne.s32.totalorder %s287, %s288
      %p302 = scmp.eq.s32.totalorder %s34, 1
      %p303 = por %p301, %p302
      %p305 = scmp.ne.s32.totalorder %s288, %s304
      %p306 = scmp.eq.s32.totalorder %s34, 0
      %p307 = por %p305, %p306
      %p308 = scmp.le.s32.totalorder 1, %s28
      %p309 = scmp.lt.s32.totalorder %s28, 3
      %p310 = pnand %p308, %p309
      %p311 = pneg %p310
      // Predicated region
      $region9: #{tpu_custom_call.1} parent=5 // pred_check
        _
      $region10: #{tpu_custom_call.1} parent=5 // pred_check_branch
        %313 = sbr.rel (%p310) target = $region12
      $region11: #{tpu_custom_call.1} parent=5 // pred_region
        %s314 = ssub.s32 %s28, 1
        // Predicated region
        $region13: #{tpu_custom_call.1} parent=11 // pred_check
          %p315 = pneg %p127
        $region14: #{tpu_custom_call.1} parent=11 // pred_check_branch
          %317 = sbr.rel (%p315) target = $region16
        $region15: #{tpu_custom_call.1} parent=11 // pred_region
          %s319 = ssub.s32 512, 512
          %320 = vsyncadd [#allocation9], %s319
          %s321 = sshll.u32 [#allocation8], 4
          %s322 = int_to_ptr.vmem [resolvable:$true] %s321
          %327 = dma.hbm_to_vmem [thread:$0]  %s3, 512, %s322, [#allocation9], 128, 128, 8
        $region16: #{tpu_custom_call.1} parent=11 // pred_fallthru
          _
        // Predicated region
        $region17: #{tpu_custom_call.1} parent=11 // pred_check
          %p328 = pneg %p148
        $region18: #{tpu_custom_call.1} parent=11 // pred_check_branch
          %330 = sbr.rel (%p328) target = $region20
        $region19: #{tpu_custom_call.1} parent=11 // pred_region
          _
        $region20: #{tpu_custom_call.1} parent=11 // pred_fallthru
          _
        // Predicated region
        $region21: #{tpu_custom_call.1} parent=11 // pred_check
          %p331 = pneg %p169
        $region22: #{tpu_custom_call.1} parent=11 // pred_check_branch
          %333 = sbr.rel (%p331) target = $region24
        $region23: #{tpu_custom_call.1} parent=11 // pred_region
          %s335 = ssub.s32 512, 512
          %336 = vsyncadd [#allocation9], %s335
          %s337 = sshll.u32 [#allocation10], 4
          %s338 = int_to_ptr.vmem [resolvable:$true] %s337
          %343 = dma.hbm_to_vmem [thread:$0]  %s5, 512, %s338, [#allocation9], 128, 128, 8
        $region24: #{tpu_custom_call.1} parent=11 // pred_fallthru
          _
        // Predicated region
        $region25: #{tpu_custom_call.1} parent=11 // pred_check
          %p344 = pneg %p190
        $region26: #{tpu_custom_call.1} parent=11 // pred_check_branch
          %346 = sbr.rel (%p344) target = $region28
        $region27: #{tpu_custom_call.1} parent=11 // pred_region
          _
        $region28: #{tpu_custom_call.1} parent=11 // pred_fallthru
          _
        // Predicated region
        $region29: #{tpu_custom_call.1} parent=11 // pred_check
          %p347 = pneg %p211
        $region30: #{tpu_custom_call.1} parent=11 // pred_check_branch
          %349 = sbr.rel (%p347) target = $region32
        $region31: #{tpu_custom_call.1} parent=11 // pred_region
          %s351 = ssub.s32 512, 512
          %352 = vsyncadd [#allocation12], %s351
          %s353 = sshll.u32 [#allocation11], 4
          %s354 = int_to_ptr.vmem [resolvable:$true] %s353
          %359 = dma.hbm_to_vmem [thread:$0]  %s7, 512, %s354, [#allocation12], 128, 128, 8
        $region32: #{tpu_custom_call.1} parent=11 // pred_fallthru
          _
        // Predicated region
        $region33: #{tpu_custom_call.1} parent=11 // pred_check
          %p360 = pneg %p232
        $region34: #{tpu_custom_call.1} parent=11 // pred_check_branch
          %362 = sbr.rel (%p360) target = $region36
        $region35: #{tpu_custom_call.1} parent=11 // pred_region
          _
        $region36: #{tpu_custom_call.1} parent=11 // pred_fallthru
          _
        // Predicated region
        $region37: #{tpu_custom_call.1} parent=11 // pred_check
          %p363 = pneg %p253
        $region38: #{tpu_custom_call.1} parent=11 // pred_check_branch
          %365 = sbr.rel (%p363) target = $region40
        $region39: #{tpu_custom_call.1} parent=11 // pred_region
          _
        $region40: #{tpu_custom_call.1} parent=11 // pred_fallthru
          _
        // Predicated region
        $region41: #{tpu_custom_call.1} parent=11 // pred_check
          %p366 = pneg %p274
        $region42: #{tpu_custom_call.1} parent=11 // pred_check_branch
          %368 = sbr.rel (%p366) target = $region44
        $region43: #{tpu_custom_call.1} parent=11 // pred_region
          _
        $region44: #{tpu_custom_call.1} parent=11 // pred_fallthru
          _
      $region12: #{tpu_custom_call.1} parent=5 // pred_fallthru
        _
      %p369 = scmp.lt.s32.totalorder %s28, 2
      // Predicated region
      $region45: #{tpu_custom_call.1} parent=5 // pred_check
        %p370 = pneg %p369
      $region46: #{tpu_custom_call.1} parent=5 // pred_check_branch
        %372 = sbr.rel (%p370) target = $region48
      $region47: #{tpu_custom_call.1} parent=5 // pred_region
        // Predicated region
        $region49: #{tpu_custom_call.1} parent=47 // pred_check
          %p373 = pneg %p48
        $region50: #{tpu_custom_call.1} parent=47 // pred_check_branch
          %375 = sbr.rel (%p373) target = $region52
        $region51: #{tpu_custom_call.1} parent=47 // pred_region
          %s376 = sand.u32 %s38, 1
          %s377 = scalar_lea.sflag [#allocation3], %s376
          %s378 = sand.u32 %s38, 1
          %s379 = smul.addr %s378, 8
          %s380 = scalar_lea.vmem [#allocation2], %s379
          %s382 = ssub.s32 128, 128
          %383 = vsyncadd %s377, %s382
          %s384 = smul.addr %s28, 128
          %s385 = scalar_lea.hbm %s0, %s384
          %s387 = sshll.u32 %s380, 4
          %s388 = int_to_ptr.vmem [resolvable:$true] %s387
          %390 = dma.hbm_to_vmem [thread:$0]  %s385, 128, %s388, %s377
        $region52: #{tpu_custom_call.1} parent=47 // pred_fallthru
          _
        // Predicated region
        $region53: #{tpu_custom_call.1} parent=47 // pred_check
          %p391 = pneg %p74
        $region54: #{tpu_custom_call.1} parent=47 // pred_check_branch
          %393 = sbr.rel (%p391) target = $region56
        $region55: #{tpu_custom_call.1} parent=47 // pred_region
          %s394 = sand.u32 %s28, 1
          %s395 = scalar_lea.sflag [#allocation6], %s394
          %s396 = sand.u32 %s64, 1
          %s397 = smul.addr %s396, 8
          %s398 = scalar_lea.vmem [#allocation5], %s397
          %s400 = ssub.s32 128, 128
          %401 = vsyncadd %s395, %s400
          %s402 = smul.addr %s28, 128
          %s403 = scalar_lea.hbm %s1, %s402
          %s405 = sshll.u32 %s398, 4
          %s406 = int_to_ptr.vmem [resolvable:$true] %s405
          %408 = dma.hbm_to_vmem [thread:$0]  %s403, 128, %s406, %s395
        $region56: #{tpu_custom_call.1} parent=47 // pred_fallthru
          _
        // Predicated region
        $region57: #{tpu_custom_call.1} parent=47 // pred_check
          %p409 = pneg %p100
        $region58: #{tpu_custom_call.1} parent=47 // pred_check_branch
          %411 = sbr.rel (%p409) target = $region60
        $region59: #{tpu_custom_call.1} parent=47 // pred_region
          %s412 = sand.u32 %s28, 1
          %s413 = scalar_lea.sflag [#allocation6], %s412
          %s414 = sand.u32 %s90, 1
          %s415 = smul.addr %s414, 8
          %s416 = scalar_lea.vmem [#allocation7], %s415
          %s418 = ssub.s32 128, 128
          %419 = vsyncadd %s413, %s418
          %s420 = smul.addr %s28, 128
          %s421 = scalar_lea.hbm %s2, %s420
          %s423 = sshll.u32 %s416, 4
          %s424 = int_to_ptr.vmem [resolvable:$true] %s423
          %426 = dma.hbm_to_vmem [thread:$0]  %s421, 128, %s424, %s413
        $region60: #{tpu_custom_call.1} parent=47 // pred_fallthru
          _
      $region48: #{tpu_custom_call.1} parent=5 // pred_fallthru
        _
      %p427 = scmp.le.s32.totalorder 1, %s28
      %p428 = scmp.lt.s32.totalorder %s28, 3
      %p429 = pnand %p427, %p428
      %p430 = pneg %p429
      // Predicated region
      $region61: #{tpu_custom_call.1} parent=5 // pred_check
        _
      $region62: #{tpu_custom_call.1} parent=5 // pred_check_branch
        %432 = sbr.rel (%p429) target = $region64
      $region63: #{tpu_custom_call.1} parent=5 // pred_region
        %s433 = ssub.s32 %s28, 1
        %s434 = sand.u32 %s41, 1
        %s435 = scalar_lea.sflag [#allocation3], %s434
        %s436 = sand.u32 %s41, 1
        %s437 = smul.addr %s436, 8
        %s438 = scalar_lea.vmem [#allocation2], %s437
        // Predicated region
        $region65: #{tpu_custom_call.1} parent=63 // pred_check
          %p439 = pneg %p54
        $region66: #{tpu_custom_call.1} parent=63 // pred_check_branch
          %441 = sbr.rel (%p439) target = $region68
        $region67: #{tpu_custom_call.1} parent=63 // pred_region
          %442 = dma.done %s435, 128
        $region68: #{tpu_custom_call.1} parent=63 // pred_fallthru
          _
        %s443 = sand.u32 %s33, 1
        %s444 = scalar_lea.sflag [#allocation6], %s443
        %s445 = sand.u32 %s67, 1
        %s446 = smul.addr %s445, 8
        %s447 = scalar_lea.vmem [#allocation5], %s446
        // Predicated region
        $region69: #{tpu_custom_call.1} parent=63 // pred_check
          %p448 = pneg %p80
        $region70: #{tpu_custom_call.1} parent=63 // pred_check_branch
          %450 = sbr.rel (%p448) target = $region72
        $region71: #{tpu_custom_call.1} parent=63 // pred_region
          %451 = dma.done %s444, 128
        $region72: #{tpu_custom_call.1} parent=63 // pred_fallthru
          _
        %s452 = sand.u32 %s33, 1
        %s453 = scalar_lea.sflag [#allocation6], %s452
        %s454 = sand.u32 %s93, 1
        %s455 = smul.addr %s454, 8
        %s456 = scalar_lea.vmem [#allocation7], %s455
        // Predicated region
        $region73: #{tpu_custom_call.1} parent=63 // pred_check
          %p457 = pneg %p106
        $region74: #{tpu_custom_call.1} parent=63 // pred_check_branch
          %459 = sbr.rel (%p457) target = $region76
        $region75: #{tpu_custom_call.1} parent=63 // pred_region
          %460 = dma.done %s453, 128
        $region76: #{tpu_custom_call.1} parent=63 // pred_fallthru
          _
        // Predicated region
        $region77: #{tpu_custom_call.1} parent=63 // pred_check
          %p461 = pneg %p127
        $region78: #{tpu_custom_call.1} parent=63 // pred_check_branch
          %463 = sbr.rel (%p461) target = $region80
        $region79: #{tpu_custom_call.1} parent=63 // pred_region
          %464 = dma.done [#allocation9], 512
        $region80: #{tpu_custom_call.1} parent=63 // pred_fallthru
          _
        // Predicated region
        $region81: #{tpu_custom_call.1} parent=63 // pred_check
          %p465 = pneg %p169
        $region82: #{tpu_custom_call.1} parent=63 // pred_check_branch
          %467 = sbr.rel (%p465) target = $region84
        $region83: #{tpu_custom_call.1} parent=63 // pred_region
          %468 = dma.done [#allocation9], 512
        $region84: #{tpu_custom_call.1} parent=63 // pred_fallthru
          _
        // Predicated region
        $region85: #{tpu_custom_call.1} parent=63 // pred_check
          %p469 = pneg %p211
        $region86: #{tpu_custom_call.1} parent=63 // pred_check_branch
          %471 = sbr.rel (%p469) target = $region88
        $region87: #{tpu_custom_call.1} parent=63 // pred_region
          %472 = dma.done [#allocation12], 512
        $region88: #{tpu_custom_call.1} parent=63 // pred_fallthru
          _
        %s473 = sand.u32 %s41, 1
        %s474 = scalar_lea.sflag [#allocation3], %s473
        %s475 = sand.u32 %s41, 1
        %s476 = smul.addr %s475, 8
        %s477 = scalar_lea.vmem [#allocation2], %s476
        %p478 = pneg %p54
        %p479 = pneg %p51
        %s480 = sand.u32 %s33, 1
        %s481 = scalar_lea.sflag [#allocation6], %s480
        %s482 = sand.u32 %s67, 1
        %s483 = smul.addr %s482, 8
        %s484 = scalar_lea.vmem [#allocation5], %s483
        %p485 = pneg %p80
        %p486 = pneg %p77
        %s487 = sand.u32 %s33, 1
        %s488 = scalar_lea.sflag [#allocation6], %s487
        %s489 = sand.u32 %s93, 1
        %s490 = smul.addr %s489, 8
        %s491 = scalar_lea.vmem [#allocation7], %s490
        %p492 = pneg %p106
        %p493 = pneg %p103
        %p494 = pneg %p127
        %p495 = pneg %p124
        %p496 = pneg %p148
        %p497 = pneg %p145
        %p498 = pneg %p169
        %p499 = pneg %p166
        %p500 = pneg %p190
        %p501 = pneg %p187
        %p502 = pneg %p211
        %p503 = pneg %p208
        %p504 = pneg %p232
        %p505 = pneg %p229
        %p506 = pneg %p253
        %p507 = pneg %p250
        %p508 = pneg %p274
        %p509 = pneg %p271
        %p510 = pneg %p300
        %p511 = pneg %p297
        %s512 = sand.u32 %s287, 1
        %s513 = scalar_lea.sflag [#allocation4], %s512
        %s514 = sand.u32 %s287, 1
        %s515 = smul.addr %s514, 8
        %s516 = scalar_lea.vmem [#allocation13], %s515
        %v517 = vld [vmem:[%s438] sm:$0xff]
        %v518 = vld [vmem:[%s447] sm:$0xff]
        %v519 = vld [vmem:[%s456] sm:$0xff]
        %v520 = vld [vmem:[#allocation8] sm:$0xff]
        %v521 = vld [vmem:[#allocation8 + $0x8] sm:$0xff]
        %v522 = vld [vmem:[#allocation8 + $0x10] sm:$0xff]
        %v523 = vld [vmem:[#allocation8 + $0x18] sm:$0xff]
        %v524 = vld [vmem:[%s4] sm:$0x1]
        %v526 = vlaneseq
        %v527 = vshrl.u32 %v526, 7
        %v528 = vsub.s32 0, %v527
        %v529 = vrot.slane %v524, %v528
        %vm531 = vcmask 261120
        %v533 = vsel %vm531, %v517, 0
        %535 = vmatprep.subr.mxu0 0.0
        %536 = vmatpush1.msra.mxu0 %v520
        %537 = vmatprep.subr.mxu0 0.0
        %538 = vmatpush1.msra.mxu0 %v521
        %539 = vmatprep.subr.mxu0 0.0
        %540 = vmatpush1.msra.mxu0 %v522
        %541 = vmatprep.subr.mxu0 0.0
        %542 = vmatpush1.msra.mxu0 %v523
        %543 = vmatprep.subr.mxu0 0.0
        %544 = vmatpush1.msra.mxu0 0.0
        %545 = vmatprep.subr.mxu0 0.0
        %546 = vmatpush1.msra.mxu0 0.0
        %547 = vmatprep.subr.mxu0 0.0
        %548 = vmatpush1.msra.mxu0 0.0
        %549 = vmatprep.subr.mxu0 0.0
        %550 = vmatpush1.msra.mxu0 0.0
        %551 = vmatprep.subr.mxu0 0.0
        %552 = vmatpush1.msra.mxu0 0.0
        %553 = vmatprep.subr.mxu0 0.0
        %554 = vmatpush1.msra.mxu0 0.0
        %555 = vmatprep.subr.mxu0 0.0
        %556 = vmatpush1.msra.mxu0 0.0
        %557 = vmatprep.subr.mxu0 0.0
        %558 = vmatpush1.msra.mxu0 0.0
        %559 = vmatprep.subr.mxu0 0.0
        %560 = vmatpush1.msra.mxu0 0.0
        %561 = vmatprep.subr.mxu0 0.0
        %562 = vmatpush1.msra.mxu0 0.0
        %563 = vmatprep.subr.mxu0 0.0
        %564 = vmatpush1.msra.mxu0 0.0
        %565 = vmatprep.subr.mxu0 0.0
        %566 = vmatpush1.msra.mxu0 0.0
        %567 = vmatprep.subr.mxu0 0.0
        %568 = vmatpush1.msra.mxu0 0.0
        %569 = vmatprep.subr.mxu0 0.0
        %570 = vmatpush1.msra.mxu0 0.0
        %571 = vmatprep.subr.mxu0 0.0
        %572 = vmatpush1.msra.mxu0 0.0
        %573 = vmatprep.subr.mxu0 0.0
        %574 = vmatpush1.msra.mxu0 0.0
        %575 = vmatprep.subr.mxu0 0.0
        %576 = vmatpush1.msra.mxu0 0.0
        %577 = vmatprep.subr.mxu0 0.0
        %578 = vmatpush1.msra.mxu0 0.0
        %579 = vmatprep.subr.mxu0 0.0
        %580 = vmatpush1.msra.mxu0 0.0
        %581 = vmatprep.subr.mxu0 0.0
        %582 = vmatpush1.msra.mxu0 0.0
        %583 = vmatprep.subr.mxu0 0.0
        %584 = vmatpush1.msra.mxu0 0.0
        %585 = vmatprep.subr.mxu0 0.0
        %586 = vmatpush1.msra.mxu0 0.0
        %587 = vmatprep.subr.mxu0 0.0
        %588 = vmatpush1.msra.mxu0 0.0
        %589 = vmatprep.subr.mxu0 0.0
        %590 = vmatpush1.msra.mxu0 0.0
        %591 = vmatprep.subr.mxu0 0.0
        %592 = vmatpush1.msra.mxu0 0.0
        %593 = vmatprep.subr.mxu0 0.0
        %594 = vmatpush1.msra.mxu0 0.0
        %595 = vmatprep.subr.mxu0 0.0
        %596 = vmatpush1.msra.mxu0 0.0
        %597 = vmatprep.subr.mxu0 0.0
        %598 = vmatpush1.msra.mxu0 0.0
        %599 = vmatprep.mubr.f32.mxu0 0.0
        %600 = vmatmul.mubr.f32.gmra.mrb[0].mxu0 %v533
        %v601 = vpop.f32.mrb[0].mxu0
        %v602 = vadd.f32 %v529, %v601
        %v603 = vpop.f32.mrb[0].mxu0
        %604 = vdwg.mxu0
        %v605 = vld [vmem:[#allocation10] sm:$0xff]
        %v606 = vld [vmem:[#allocation10 + $0x8] sm:$0xff]
        %v607 = vld [vmem:[#allocation10 + $0x10] sm:$0xff]
        %v608 = vld [vmem:[#allocation10 + $0x18] sm:$0xff]
        %v609 = vld [vmem:[%s6] sm:$0x1]
        %v611 = vlaneseq
        %v612 = vshrl.u32 %v611, 7
        %v613 = vsub.s32 0, %v612
        %v614 = vrot.slane %v609, %v613
        %v617 = vsel %vm531, %v518, 0
        %619 = vmatprep.subr.mxu0 0.0
        %620 = vmatpush1.msra.mxu0 %v605
        %621 = vmatprep.subr.mxu0 0.0
        %622 = vmatpush1.msra.mxu0 %v606
        %623 = vmatprep.subr.mxu0 0.0
        %624 = vmatpush1.msra.mxu0 %v607
        %625 = vmatprep.subr.mxu0 0.0
        %626 = vmatpush1.msra.mxu0 %v608
        %627 = vmatprep.subr.mxu0 0.0
        %628 = vmatpush1.msra.mxu0 0.0
        %629 = vmatprep.subr.mxu0 0.0
        %630 = vmatpush1.msra.mxu0 0.0
        %631 = vmatprep.subr.mxu0 0.0
        %632 = vmatpush1.msra.mxu0 0.0
        %633 = vmatprep.subr.mxu0 0.0
        %634 = vmatpush1.msra.mxu0 0.0
        %635 = vmatprep.subr.mxu0 0.0
        %636 = vmatpush1.msra.mxu0 0.0
        %637 = vmatprep.subr.mxu0 0.0
        %638 = vmatpush1.msra.mxu0 0.0
        %639 = vmatprep.subr.mxu0 0.0
        %640 = vmatpush1.msra.mxu0 0.0
        %641 = vmatprep.subr.mxu0 0.0
        %642 = vmatpush1.msra.mxu0 0.0
        %643 = vmatprep.subr.mxu0 0.0
        %644 = vmatpush1.msra.mxu0 0.0
        %645 = vmatprep.subr.mxu0 0.0
        %646 = vmatpush1.msra.mxu0 0.0
        %647 = vmatprep.subr.mxu0 0.0
        %648 = vmatpush1.msra.mxu0 0.0
        %649 = vmatprep.subr.mxu0 0.0
        %650 = vmatpush1.msra.mxu0 0.0
        %651 = vmatprep.subr.mxu0 0.0
        %652 = vmatpush1.msra.mxu0 0.0
        %653 = vmatprep.subr.mxu0 0.0
        %654 = vmatpush1.msra.mxu0 0.0
        %655 = vmatprep.subr.mxu0 0.0
        %656 = vmatpush1.msra.mxu0 0.0
        %657 = vmatprep.subr.mxu0 0.0
        %658 = vmatpush1.msra.mxu0 0.0
        %659 = vmatprep.subr.mxu0 0.0
        %660 = vmatpush1.msra.mxu0 0.0
        %661 = vmatprep.subr.mxu0 0.0
        %662 = vmatpush1.msra.mxu0 0.0
        %663 = vmatprep.subr.mxu0 0.0
        %664 = vmatpush1.msra.mxu0 0.0
        %665 = vmatprep.subr.mxu0 0.0
        %666 = vmatpush1.msra.mxu0 0.0
        %667 = vmatprep.subr.mxu0 0.0
        %668 = vmatpush1.msra.mxu0 0.0
        %669 = vmatprep.subr.mxu0 0.0
        %670 = vmatpush1.msra.mxu0 0.0
        %671 = vmatprep.subr.mxu0 0.0
        %672 = vmatpush1.msra.mxu0 0.0
        %673 = vmatprep.subr.mxu0 0.0
        %674 = vmatpush1.msra.mxu0 0.0
        %675 = vmatprep.subr.mxu0 0.0
        %676 = vmatpush1.msra.mxu0 0.0
        %677 = vmatprep.subr.mxu0 0.0
        %678 = vmatpush1.msra.mxu0 0.0
        %679 = vmatprep.subr.mxu0 0.0
        %680 = vmatpush1.msra.mxu0 0.0
        %681 = vmatprep.subr.mxu0 0.0
        %682 = vmatpush1.msra.mxu0 0.0
        %683 = vmatprep.mubr.f32.mxu0 0.0
        %684 = vmatmul.mubr.f32.gmra.mrb[0].mxu0 %v617
        %v685 = vpop.f32.mrb[0].mxu0
        %v686 = vadd.f32 %v614, %v685
        %v687 = vpop.f32.mrb[0].mxu0
        %688 = vdwg.mxu0
        %v689 = vld [vmem:[#allocation11] sm:$0xff]
        %v690 = vld [vmem:[#allocation11 + $0x8] sm:$0xff]
        %v691 = vld [vmem:[#allocation11 + $0x10] sm:$0xff]
        %v692 = vld [vmem:[#allocation11 + $0x18] sm:$0xff]
        %v693 = vld [vmem:[%s8] sm:$0x1]
        %v695 = vlaneseq
        %v696 = vshrl.u32 %v695, 7
        %v697 = vsub.s32 0, %v696
        %v698 = vrot.slane %v693, %v697
        %v701 = vsel %vm531, %v519, 0
        %703 = vmatprep.subr.mxu0 0.0
        %704 = vmatpush1.msra.mxu0 %v689
        %705 = vmatprep.subr.mxu0 0.0
        %706 = vmatpush1.msra.mxu0 %v690
        %707 = vmatprep.subr.mxu0 0.0
        %708 = vmatpush1.msra.mxu0 %v691
        %709 = vmatprep.subr.mxu0 0.0
        %710 = vmatpush1.msra.mxu0 %v692
        %711 = vmatprep.subr.mxu0 0.0
        %712 = vmatpush1.msra.mxu0 0.0
        %713 = vmatprep.subr.mxu0 0.0
        %714 = vmatpush1.msra.mxu0 0.0
        %715 = vmatprep.subr.mxu0 0.0
        %716 = vmatpush1.msra.mxu0 0.0
        %717 = vmatprep.subr.mxu0 0.0
        %718 = vmatpush1.msra.mxu0 0.0
        %719 = vmatprep.subr.mxu0 0.0
        %720 = vmatpush1.msra.mxu0 0.0
        %721 = vmatprep.subr.mxu0 0.0
        %722 = vmatpush1.msra.mxu0 0.0
        %723 = vmatprep.subr.mxu0 0.0
        %724 = vmatpush1.msra.mxu0 0.0
        %725 = vmatprep.subr.mxu0 0.0
        %726 = vmatpush1.msra.mxu0 0.0
        %727 = vmatprep.subr.mxu0 0.0
        %728 = vmatpush1.msra.mxu0 0.0
        %729 = vmatprep.subr.mxu0 0.0
        %730 = vmatpush1.msra.mxu0 0.0
        %731 = vmatprep.subr.mxu0 0.0
        %732 = vmatpush1.msra.mxu0 0.0
        %733 = vmatprep.subr.mxu0 0.0
        %734 = vmatpush1.msra.mxu0 0.0
        %735 = vmatprep.subr.mxu0 0.0
        %736 = vmatpush1.msra.mxu0 0.0
        %737 = vmatprep.subr.mxu0 0.0
        %738 = vmatpush1.msra.mxu0 0.0
        %739 = vmatprep.subr.mxu0 0.0
        %740 = vmatpush1.msra.mxu0 0.0
        %741 = vmatprep.subr.mxu0 0.0
        %742 = vmatpush1.msra.mxu0 0.0
        %743 = vmatprep.subr.mxu0 0.0
        %744 = vmatpush1.msra.mxu0 0.0
        %745 = vmatprep.subr.mxu0 0.0
        %746 = vmatpush1.msra.mxu0 0.0
        %747 = vmatprep.subr.mxu0 0.0
        %748 = vmatpush1.msra.mxu0 0.0
        %749 = vmatprep.subr.mxu0 0.0
        %750 = vmatpush1.msra.mxu0 0.0
        %751 = vmatprep.subr.mxu0 0.0
        %752 = vmatpush1.msra.mxu0 0.0
        %753 = vmatprep.subr.mxu0 0.0
        %754 = vmatpush1.msra.mxu0 0.0
        %755 = vmatprep.subr.mxu0 0.0
        %756 = vmatpush1.msra.mxu0 0.0
        %757 = vmatprep.subr.mxu0 0.0
        %758 = vmatpush1.msra.mxu0 0.0
        %759 = vmatprep.subr.mxu0 0.0
        %760 = vmatpush1.msra.mxu0 0.0
        %761 = vmatprep.subr.mxu0 0.0
        %762 = vmatpush1.msra.mxu0 0.0
        %763 = vmatprep.subr.mxu0 0.0
        %764 = vmatpush1.msra.mxu0 0.0
        %765 = vmatprep.subr.mxu0 0.0
        %766 = vmatpush1.msra.mxu0 0.0
        %767 = vmatprep.mubr.f32.mxu0 0.0
        %768 = vmatmul.mubr.f32.gmra.mrb[0].mxu0 %v701
        %v769 = vpop.f32.mrb[0].mxu0
        %v770 = vadd.f32 %v698, %v769
        %v771 = vpop.f32.mrb[0].mxu0
        %772 = vdwg.mxu0
        %vm773 = vcmask 64512
        %v775 = vsel %vm773, %v602, 0
        %v778 = vsel %vm773, %v686, 0
        %780 = vmatprep.subr.mxu0 0.0
        %781 = vmatpush1.xpose.msra.mxu0 %v778
        %782 = vmatprep.subr.mxu0 0.0
        %783 = vmatpush1.xpose.msra.mxu0 0.0
        %784 = vmatprep.subr.mxu0 0.0
        %785 = vmatpush1.xpose.msra.mxu0 0.0
        %786 = vmatprep.subr.mxu0 0.0
        %787 = vmatpush1.xpose.msra.mxu0 0.0
        %788 = vmatprep.subr.mxu0 0.0
        %789 = vmatpush1.xpose.msra.mxu0 0.0
        %790 = vmatprep.subr.mxu0 0.0
        %791 = vmatpush1.xpose.msra.mxu0 0.0
        %792 = vmatprep.subr.mxu0 0.0
        %793 = vmatpush1.xpose.msra.mxu0 0.0
        %794 = vmatprep.subr.mxu0 0.0
        %795 = vmatpush1.xpose.msra.mxu0 0.0
        %796 = vmatprep.subr.mxu0 0.0
        %797 = vmatpush1.xpose.msra.mxu0 0.0
        %798 = vmatprep.subr.mxu0 0.0
        %799 = vmatpush1.xpose.msra.mxu0 0.0
        %800 = vmatprep.subr.mxu0 0.0
        %801 = vmatpush1.xpose.msra.mxu0 0.0
        %802 = vmatprep.subr.mxu0 0.0
        %803 = vmatpush1.xpose.msra.mxu0 0.0
        %804 = vmatprep.subr.mxu0 0.0
        %805 = vmatpush1.xpose.msra.mxu0 0.0
        %806 = vmatprep.subr.mxu0 0.0
        %807 = vmatpush1.xpose.msra.mxu0 0.0
        %808 = vmatprep.subr.mxu0 0.0
        %809 = vmatpush1.xpose.msra.mxu0 0.0
        %810 = vmatprep.subr.mxu0 0.0
        %811 = vmatpush1.xpose.msra.mxu0 0.0
        %812 = vmatprep.subr.mxu0 0.0
        %813 = vmatpush1.xpose.msra.mxu0 0.0
        %814 = vmatprep.subr.mxu0 0.0
        %815 = vmatpush1.xpose.msra.mxu0 0.0
        %816 = vmatprep.subr.mxu0 0.0
        %817 = vmatpush1.xpose.msra.mxu0 0.0
        %818 = vmatprep.subr.mxu0 0.0
        %819 = vmatpush1.xpose.msra.mxu0 0.0
        %820 = vmatprep.subr.mxu0 0.0
        %821 = vmatpush1.xpose.msra.mxu0 0.0
        %822 = vmatprep.subr.mxu0 0.0
        %823 = vmatpush1.xpose.msra.mxu0 0.0
        %824 = vmatprep.subr.mxu0 0.0
        %825 = vmatpush1.xpose.msra.mxu0 0.0
        %826 = vmatprep.subr.mxu0 0.0
        %827 = vmatpush1.xpose.msra.mxu0 0.0
        %828 = vmatprep.subr.mxu0 0.0
        %829 = vmatpush1.xpose.msra.mxu0 0.0
        %830 = vmatprep.subr.mxu0 0.0
        %831 = vmatpush1.xpose.msra.mxu0 0.0
        %832 = vmatprep.subr.mxu0 0.0
        %833 = vmatpush1.xpose.msra.mxu0 0.0
        %834 = vmatprep.subr.mxu0 0.0
        %835 = vmatpush1.xpose.msra.mxu0 0.0
        %836 = vmatprep.subr.mxu0 0.0
        %837 = vmatpush1.xpose.msra.mxu0 0.0
        %838 = vmatprep.subr.mxu0 0.0
        %839 = vmatpush1.xpose.msra.mxu0 0.0
        %840 = vmatprep.subr.mxu0 0.0
        %841 = vmatpush1.xpose.msra.mxu0 0.0
        %842 = vmatprep.subr.mxu0 0.0
        %843 = vmatpush1.xpose.msra.mxu0 0.0
        %844 = vmatprep.mubr.f32.mxu0 0.0
        %845 = vmatmul.mubr.f32.gmra.mrb[0].mxu0 %v775
        %v846 = vpop.f32.mrb[0].mxu0
        %v847 = vadd.f32 0.0, %v846
        %v848 = vpop.f32.mrb[0].mxu0
        %849 = vdwg.mxu0
        %v850 = vsel %vm773, %v847, -inf
        %851 = vmax.xlane.f32.xlu0 %v850
        %v852 = vpop.xlane.xlu0 %851
        %v853 = vsub.f32 %v847, %v852
        %v854 = vmul.f32 %v853, 1.442695
        %v855 = vpow.pop %v854
        %v856 = vsel %vm773, %v855, 0.0
        %857 = vadd.xlane.f32.xlu0 %v856
        %v858 = vpop.xlane.xlu0 %857
        %v859 = vrcp.pop %v858
        %v860 = vmul.f32 %v855, %v859
        %v862 = vsel %vm773, %v860, 0
        %864 = vmatprep.subr.mxu0 0.0
        %865 = vmatpush1.msra.mxu0 %v770
        %866 = vmatprep.subr.mxu0 0.0
        %867 = vmatpush1.msra.mxu0 0.0
        %868 = vmatprep.subr.mxu0 0.0
        %869 = vmatpush1.msra.mxu0 0.0
        %870 = vmatprep.subr.mxu0 0.0
        %871 = vmatpush1.msra.mxu0 0.0
        %872 = vmatprep.subr.mxu0 0.0
        %873 = vmatpush1.msra.mxu0 0.0
        %874 = vmatprep.subr.mxu0 0.0
        %875 = vmatpush1.msra.mxu0 0.0
        %876 = vmatprep.subr.mxu0 0.0
        %877 = vmatpush1.msra.mxu0 0.0
        %878 = vmatprep.subr.mxu0 0.0
        %879 = vmatpush1.msra.mxu0 0.0
        %880 = vmatprep.subr.mxu0 0.0
        %881 = vmatpush1.msra.mxu0 0.0
        %882 = vmatprep.subr.mxu0 0.0
        %883 = vmatpush1.msra.mxu0 0.0
        %884 = vmatprep.subr.mxu0 0.0
        %885 = vmatpush1.msra.mxu0 0.0
        %886 = vmatprep.subr.mxu0 0.0
        %887 = vmatpush1.msra.mxu0 0.0
        %888 = vmatprep.subr.mxu0 0.0
        %889 = vmatpush1.msra.mxu0 0.0
        %890 = vmatprep.subr.mxu0 0.0
        %891 = vmatpush1.msra.mxu0 0.0
        %892 = vmatprep.subr.mxu0 0.0
        %893 = vmatpush1.msra.mxu0 0.0
        %894 = vmatprep.subr.mxu0 0.0
        %895 = vmatpush1.msra.mxu0 0.0
        %896 = vmatprep.subr.mxu0 0.0
        %897 = vmatpush1.msra.mxu0 0.0
        %898 = vmatprep.subr.mxu0 0.0
        %899 = vmatpush1.msra.mxu0 0.0
        %900 = vmatprep.subr.mxu0 0.0
        %901 = vmatpush1.msra.mxu0 0.0
        %902 = vmatprep.subr.mxu0 0.0
        %903 = vmatpush1.msra.mxu0 0.0
        %904 = vmatprep.subr.mxu0 0.0
        %905 = vmatpush1.msra.mxu0 0.0
        %906 = vmatprep.subr.mxu0 0.0
        %907 = vmatpush1.msra.mxu0 0.0
        %908 = vmatprep.subr.mxu0 0.0
        %909 = vmatpush1.msra.mxu0 0.0
        %910 = vmatprep.subr.mxu0 0.0
        %911 = vmatpush1.msra.mxu0 0.0
        %912 = vmatprep.subr.mxu0 0.0
        %913 = vmatpush1.msra.mxu0 0.0
        %914 = vmatprep.subr.mxu0 0.0
        %915 = vmatpush1.msra.mxu0 0.0
        %916 = vmatprep.subr.mxu0 0.0
        %917 = vmatpush1.msra.mxu0 0.0
        %918 = vmatprep.subr.mxu0 0.0
        %919 = vmatpush1.msra.mxu0 0.0
        %920 = vmatprep.subr.mxu0 0.0
        %921 = vmatpush1.msra.mxu0 0.0
        %922 = vmatprep.subr.mxu0 0.0
        %923 = vmatpush1.msra.mxu0 0.0
        %924 = vmatprep.subr.mxu0 0.0
        %925 = vmatpush1.msra.mxu0 0.0
        %926 = vmatprep.subr.mxu0 0.0
        %927 = vmatpush1.msra.mxu0 0.0
        %928 = vmatprep.mubr.f32.mxu0 0.0
        %929 = vmatmul.mubr.f32.gmra.mrb[0].mxu0 %v862
        %v930 = vpop.f32.mrb[0].mxu0
        %v931 = vadd.f32 0.0, %v930
        %v932 = vpop.f32.mrb[0].mxu0
        %933 = vdwg.mxu0
        %934 = vrot.lane.b32.xlu0 %v602, 120
        %v935 = vpop.permute.xlu0 %934
        %936 = vrot.lane.b32.xlu0 %v686, 120
        %v937 = vpop.permute.xlu0 %936
        %v938 = vsel %vm773, %v935, 0
        %v940 = vsel %vm773, %v937, 0
        %942 = vmatprep.subr.mxu0 0.0
        %943 = vmatpush1.xpose.msra.mxu0 %v940
        %944 = vmatprep.subr.mxu0 0.0
        %945 = vmatpush1.xpose.msra.mxu0 0.0
        %946 = vmatprep.subr.mxu0 0.0
        %947 = vmatpush1.xpose.msra.mxu0 0.0
        %948 = vmatprep.subr.mxu0 0.0
        %949 = vmatpush1.xpose.msra.mxu0 0.0
        %950 = vmatprep.subr.mxu0 0.0
        %951 = vmatpush1.xpose.msra.mxu0 0.0
        %952 = vmatprep.subr.mxu0 0.0
        %953 = vmatpush1.xpose.msra.mxu0 0.0
        %954 = vmatprep.subr.mxu0 0.0
        %955 = vmatpush1.xpose.msra.mxu0 0.0
        %956 = vmatprep.subr.mxu0 0.0
        %957 = vmatpush1.xpose.msra.mxu0 0.0
        %958 = vmatprep.subr.mxu0 0.0
        %959 = vmatpush1.xpose.msra.mxu0 0.0
        %960 = vmatprep.subr.mxu0 0.0
        %961 = vmatpush1.xpose.msra.mxu0 0.0
        %962 = vmatprep.subr.mxu0 0.0
        %963 = vmatpush1.xpose.msra.mxu0 0.0
        %964 = vmatprep.subr.mxu0 0.0
        %965 = vmatpush1.xpose.msra.mxu0 0.0
        %966 = vmatprep.subr.mxu0 0.0
        %967 = vmatpush1.xpose.msra.mxu0 0.0
        %968 = vmatprep.subr.mxu0 0.0
        %969 = vmatpush1.xpose.msra.mxu0 0.0
        %970 = vmatprep.subr.mxu0 0.0
        %971 = vmatpush1.xpose.msra.mxu0 0.0
        %972 = vmatprep.subr.mxu0 0.0
        %973 = vmatpush1.xpose.msra.mxu0 0.0
        %974 = vmatprep.subr.mxu0 0.0
        %975 = vmatpush1.xpose.msra.mxu0 0.0
        %976 = vmatprep.subr.mxu0 0.0
        %977 = vmatpush1.xpose.msra.mxu0 0.0
        %978 = vmatprep.subr.mxu0 0.0
        %979 = vmatpush1.xpose.msra.mxu0 0.0
        %980 = vmatprep.subr.mxu0 0.0
        %981 = vmatpush1.xpose.msra.mxu0 0.0
        %982 = vmatprep.subr.mxu0 0.0
        %983 = vmatpush1.xpose.msra.mxu0 0.0
        %984 = vmatprep.subr.mxu0 0.0
        %985 = vmatpush1.xpose.msra.mxu0 0.0
        %986 = vmatprep.subr.mxu0 0.0
        %987 = vmatpush1.xpose.msra.mxu0 0.0
        %988 = vmatprep.subr.mxu0 0.0
        %989 = vmatpush1.xpose.msra.mxu0 0.0
        %990 = vmatprep.subr.mxu0 0.0
        %991 = vmatpush1.xpose.msra.mxu0 0.0
        %992 = vmatprep.subr.mxu0 0.0
        %993 = vmatpush1.xpose.msra.mxu0 0.0
        %994 = vmatprep.subr.mxu0 0.0
        %995 = vmatpush1.xpose.msra.mxu0 0.0
        %996 = vmatprep.subr.mxu0 0.0
        %997 = vmatpush1.xpose.msra.mxu0 0.0
        %998 = vmatprep.subr.mxu0 0.0
        %999 = vmatpush1.xpose.msra.mxu0 0.0
        %1000 = vmatprep.subr.mxu0 0.0
        %1001 = vmatpush1.xpose.msra.mxu0 0.0
        %1002 = vmatprep.subr.mxu0 0.0
        %1003 = vmatpush1.xpose.msra.mxu0 0.0
        %1004 = vmatprep.subr.mxu0 0.0
        %1005 = vmatpush1.xpose.msra.mxu0 0.0
        %1006 = vmatprep.mubr.f32.mxu0 0.0
        %1007 = vmatmul.mubr.f32.gmra.mrb[0].mxu0 %v938
        %v1008 = vpop.f32.mrb[0].mxu0
        %v1009 = vadd.f32 0.0, %v1008
        %v1010 = vpop.f32.mrb[0].mxu0
        %1011 = vdwg.mxu0
        %v1012 = vsel %vm773, %v1009, -inf
        %1013 = vmax.xlane.f32.xlu0 %v1012
        %v1014 = vpop.xlane.xlu0 %1013
        %v1015 = vsub.f32 %v1009, %v1014
        %v1016 = vmul.f32 %v1015, 1.442695
        %v1017 = vpow.pop %v1016
        %v1018 = vsel %vm773, %v1017, 0.0
        %1019 = vadd.xlane.f32.xlu0 %v1018
        %v1020 = vpop.xlane.xlu0 %1019
        %v1021 = vrcp.pop %v1020
        %v1022 = vmul.f32 %v1017, %v1021
        %1024 = vrot.lane.b32.xlu0 %v770, 120
        %v1025 = vpop.permute.xlu0 %1024
        %v1028 = vsel %vm773, %v1022, 0
        %1030 = vmatprep.subr.mxu0 0.0
        %1031 = vmatpush1.msra.mxu0 %v1025
        %1032 = vmatprep.subr.mxu0 0.0
        %1033 = vmatpush1.msra.mxu0 0.0
        %1034 = vmatprep.subr.mxu0 0.0
        %1035 = vmatpush1.msra.mxu0 0.0
        %1036 = vmatprep.subr.mxu0 0.0
        %1037 = vmatpush1.msra.mxu0 0.0
        %1038 = vmatprep.subr.mxu0 0.0
        %1039 = vmatpush1.msra.mxu0 0.0
        %1040 = vmatprep.subr.mxu0 0.0
        %1041 = vmatpush1.msra.mxu0 0.0
        %1042 = vmatprep.subr.mxu0 0.0
        %1043 = vmatpush1.msra.mxu0 0.0
        %1044 = vmatprep.subr.mxu0 0.0
        %1045 = vmatpush1.msra.mxu0 0.0
        %1046 = vmatprep.subr.mxu0 0.0
        %1047 = vmatpush1.msra.mxu0 0.0
        %1048 = vmatprep.subr.mxu0 0.0
        %1049 = vmatpush1.msra.mxu0 0.0
        %1050 = vmatprep.subr.mxu0 0.0
        %1051 = vmatpush1.msra.mxu0 0.0
        %1052 = vmatprep.subr.mxu0 0.0
        %1053 = vmatpush1.msra.mxu0 0.0
        %1054 = vmatprep.subr.mxu0 0.0
        %1055 = vmatpush1.msra.mxu0 0.0
        %1056 = vmatprep.subr.mxu0 0.0
        %1057 = vmatpush1.msra.mxu0 0.0
        %1058 = vmatprep.subr.mxu0 0.0
        %1059 = vmatpush1.msra.mxu0 0.0
        %1060 = vmatprep.subr.mxu0 0.0
        %1061 = vmatpush1.msra.mxu0 0.0
        %1062 = vmatprep.subr.mxu0 0.0
        %1063 = vmatpush1.msra.mxu0 0.0
        %1064 = vmatprep.subr.mxu0 0.0
        %1065 = vmatpush1.msra.mxu0 0.0
        %1066 = vmatprep.subr.mxu0 0.0
        %1067 = vmatpush1.msra.mxu0 0.0
        %1068 = vmatprep.subr.mxu0 0.0
        %1069 = vmatpush1.msra.mxu0 0.0
        %1070 = vmatprep.subr.mxu0 0.0
        %1071 = vmatpush1.msra.mxu0 0.0
        %1072 = vmatprep.subr.mxu0 0.0
        %1073 = vmatpush1.msra.mxu0 0.0
        %1074 = vmatprep.subr.mxu0 0.0
        %1075 = vmatpush1.msra.mxu0 0.0
        %1076 = vmatprep.subr.mxu0 0.0
        %1077 = vmatpush1.msra.mxu0 0.0
        %1078 = vmatprep.subr.mxu0 0.0
        %1079 = vmatpush1.msra.mxu0 0.0
        %1080 = vmatprep.subr.mxu0 0.0
        %1081 = vmatpush1.msra.mxu0 0.0
        %1082 = vmatprep.subr.mxu0 0.0
        %1083 = vmatpush1.msra.mxu0 0.0
        %1084 = vmatprep.subr.mxu0 0.0
        %1085 = vmatpush1.msra.mxu0 0.0
        %1086 = vmatprep.subr.mxu0 0.0
        %1087 = vmatpush1.msra.mxu0 0.0
        %1088 = vmatprep.subr.mxu0 0.0
        %1089 = vmatpush1.msra.mxu0 0.0
        %1090 = vmatprep.subr.mxu0 0.0
        %1091 = vmatpush1.msra.mxu0 0.0
        %1092 = vmatprep.subr.mxu0 0.0
        %1093 = vmatpush1.msra.mxu0 0.0
        %1094 = vmatprep.mubr.f32.mxu0 0.0
        %1095 = vmatmul.mubr.f32.gmra.mrb[0].mxu0 %v1028
        %v1096 = vpop.f32.mrb[0].mxu0
        %v1097 = vadd.f32 0.0, %v1096
        %v1098 = vpop.f32.mrb[0].mxu0
        %1099 = vdwg.mxu0
        %1100 = vrot.lane.b32.xlu0 %v602, 112
        %v1101 = vpop.permute.xlu0 %1100
        %1102 = vrot.lane.b32.xlu0 %v686, 112
        %v1103 = vpop.permute.xlu0 %1102
        %v1104 = vsel %vm773, %v1101, 0
        %v1106 = vsel %vm773, %v1103, 0
        %1108 = vmatprep.subr.mxu0 0.0
        %1109 = vmatpush1.xpose.msra.mxu0 %v1106
        %1110 = vmatprep.subr.mxu0 0.0
        %1111 = vmatpush1.xpose.msra.mxu0 0.0
        %1112 = vmatprep.subr.mxu0 0.0
        %1113 = vmatpush1.xpose.msra.mxu0 0.0
        %1114 = vmatprep.subr.mxu0 0.0
        %1115 = vmatpush1.xpose.msra.mxu0 0.0
        %1116 = vmatprep.subr.mxu0 0.0
        %1117 = vmatpush1.xpose.msra.mxu0 0.0
        %1118 = vmatprep.subr.mxu0 0.0
        %1119 = vmatpush1.xpose.msra.mxu0 0.0
        %1120 = vmatprep.subr.mxu0 0.0
        %1121 = vmatpush1.xpose.msra.mxu0 0.0
        %1122 = vmatprep.subr.mxu0 0.0
        %1123 = vmatpush1.xpose.msra.mxu0 0.0
        %1124 = vmatprep.subr.mxu0 0.0
        %1125 = vmatpush1.xpose.msra.mxu0 0.0
        %1126 = vmatprep.subr.mxu0 0.0
        %1127 = vmatpush1.xpose.msra.mxu0 0.0
        %1128 = vmatprep.subr.mxu0 0.0
        %1129 = vmatpush1.xpose.msra.mxu0 0.0
        %1130 = vmatprep.subr.mxu0 0.0
        %1131 = vmatpush1.xpose.msra.mxu0 0.0
        %1132 = vmatprep.subr.mxu0 0.0
        %1133 = vmatpush1.xpose.msra.mxu0 0.0
        %1134 = vmatprep.subr.mxu0 0.0
        %1135 = vmatpush1.xpose.msra.mxu0 0.0
        %1136 = vmatprep.subr.mxu0 0.0
        %1137 = vmatpush1.xpose.msra.mxu0 0.0
        %1138 = vmatprep.subr.mxu0 0.0
        %1139 = vmatpush1.xpose.msra.mxu0 0.0
        %1140 = vmatprep.subr.mxu0 0.0
        %1141 = vmatpush1.xpose.msra.mxu0 0.0
        %1142 = vmatprep.subr.mxu0 0.0
        %1143 = vmatpush1.xpose.msra.mxu0 0.0
        %1144 = vmatprep.subr.mxu0 0.0
        %1145 = vmatpush1.xpose.msra.mxu0 0.0
        %1146 = vmatprep.subr.mxu0 0.0
        %1147 = vmatpush1.xpose.msra.mxu0 0.0
        %1148 = vmatprep.subr.mxu0 0.0
        %1149 = vmatpush1.xpose.msra.mxu0 0.0
        %1150 = vmatprep.subr.mxu0 0.0
        %1151 = vmatpush1.xpose.msra.mxu0 0.0
        %1152 = vmatprep.subr.mxu0 0.0
        %1153 = vmatpush1.xpose.msra.mxu0 0.0
        %1154 = vmatprep.subr.mxu0 0.0
        %1155 = vmatpush1.xpose.msra.mxu0 0.0
        %1156 = vmatprep.subr.mxu0 0.0
        %1157 = vmatpush1.xpose.msra.mxu0 0.0
        %1158 = vmatprep.subr.mxu0 0.0
        %1159 = vmatpush1.xpose.msra.mxu0 0.0
        %1160 = vmatprep.subr.mxu0 0.0
        %1161 = vmatpush1.xpose.msra.mxu0 0.0
        %1162 = vmatprep.subr.mxu0 0.0
        %1163 = vmatpush1.xpose.msra.mxu0 0.0
        %1164 = vmatprep.subr.mxu0 0.0
        %1165 = vmatpush1.xpose.msra.mxu0 0.0
        %1166 = vmatprep.subr.mxu0 0.0
        %1167 = vmatpush1.xpose.msra.mxu0 0.0
        %1168 = vmatprep.subr.mxu0 0.0
        %1169 = vmatpush1.xpose.msra.mxu0 0.0
        %1170 = vmatprep.subr.mxu0 0.0
        %1171 = vmatpush1.xpose.msra.mxu0 0.0
        %1172 = vmatprep.mubr.f32.mxu0 0.0
        %1173 = vmatmul.mubr.f32.gmra.mrb[0].mxu0 %v1104
        %v1174 = vpop.f32.mrb[0].mxu0
        %v1175 = vadd.f32 0.0, %v1174
        %v1176 = vpop.f32.mrb[0].mxu0
        %1177 = vdwg.mxu0
        %v1178 = vsel %vm773, %v1175, -inf
        %1179 = vmax.xlane.f32.xlu0 %v1178
        %v1180 = vpop.xlane.xlu0 %1179
        %v1181 = vsub.f32 %v1175, %v1180
        %v1182 = vmul.f32 %v1181, 1.442695
        %v1183 = vpow.pop %v1182
        %v1184 = vsel %vm773, %v1183, 0.0
        %1185 = vadd.xlane.f32.xlu0 %v1184
        %v1186 = vpop.xlane.xlu0 %1185
        %v1187 = vrcp.pop %v1186
        %v1188 = vmul.f32 %v1183, %v1187
        %1189 = vrot.lane.b32.xlu0 %v770, 112
        %v1190 = vpop.permute.xlu0 %1189
        %v1193 = vsel %vm773, %v1188, 0
        %1195 = vmatprep.subr.mxu0 0.0
        %1196 = vmatpush1.msra.mxu0 %v1190
        %1197 = vmatprep.subr.mxu0 0.0
        %1198 = vmatpush1.msra.mxu0 0.0
        %1199 = vmatprep.subr.mxu0 0.0
        %1200 = vmatpush1.msra.mxu0 0.0
        %1201 = vmatprep.subr.mxu0 0.0
        %1202 = vmatpush1.msra.mxu0 0.0
        %1203 = vmatprep.subr.mxu0 0.0
        %1204 = vmatpush1.msra.mxu0 0.0
        %1205 = vmatprep.subr.mxu0 0.0
        %1206 = vmatpush1.msra.mxu0 0.0
        %1207 = vmatprep.subr.mxu0 0.0
        %1208 = vmatpush1.msra.mxu0 0.0
        %1209 = vmatprep.subr.mxu0 0.0
        %1210 = vmatpush1.msra.mxu0 0.0
        %1211 = vmatprep.subr.mxu0 0.0
        %1212 = vmatpush1.msra.mxu0 0.0
        %1213 = vmatprep.subr.mxu0 0.0
        %1214 = vmatpush1.msra.mxu0 0.0
        %1215 = vmatprep.subr.mxu0 0.0
        %1216 = vmatpush1.msra.mxu0 0.0
        %1217 = vmatprep.subr.mxu0 0.0
        %1218 = vmatpush1.msra.mxu0 0.0
        %1219 = vmatprep.subr.mxu0 0.0
        %1220 = vmatpush1.msra.mxu0 0.0
        %1221 = vmatprep.subr.mxu0 0.0
        %1222 = vmatpush1.msra.mxu0 0.0
        %1223 = vmatprep.subr.mxu0 0.0
        %1224 = vmatpush1.msra.mxu0 0.0
        %1225 = vmatprep.subr.mxu0 0.0
        %1226 = vmatpush1.msra.mxu0 0.0
        %1227 = vmatprep.subr.mxu0 0.0
        %1228 = vmatpush1.msra.mxu0 0.0
        %1229 = vmatprep.subr.mxu0 0.0
        %1230 = vmatpush1.msra.mxu0 0.0
        %1231 = vmatprep.subr.mxu0 0.0
        %1232 = vmatpush1.msra.mxu0 0.0
        %1233 = vmatprep.subr.mxu0 0.0
        %1234 = vmatpush1.msra.mxu0 0.0
        %1235 = vmatprep.subr.mxu0 0.0
        %1236 = vmatpush1.msra.mxu0 0.0
        %1237 = vmatprep.subr.mxu0 0.0
        %1238 = vmatpush1.msra.mxu0 0.0
        %1239 = vmatprep.subr.mxu0 0.0
        %1240 = vmatpush1.msra.mxu0 0.0
        %1241 = vmatprep.subr.mxu0 0.0
        %1242 = vmatpush1.msra.mxu0 0.0
        %1243 = vmatprep.subr.mxu0 0.0
        %1244 = vmatpush1.msra.mxu0 0.0
        %1245 = vmatprep.subr.mxu0 0.0
        %1246 = vmatpush1.msra.mxu0 0.0
        %1247 = vmatprep.subr.mxu0 0.0
        %1248 = vmatpush1.msra.mxu0 0.0
        %1249 = vmatprep.subr.mxu0 0.0
        %1250 = vmatpush1.msra.mxu0 0.0
        %1251 = vmatprep.subr.mxu0 0.0
        %1252 = vmatpush1.msra.mxu0 0.0
        %1253 = vmatprep.subr.mxu0 0.0
        %1254 = vmatpush1.msra.mxu0 0.0
        %1255 = vmatprep.subr.mxu0 0.0
        %1256 = vmatpush1.msra.mxu0 0.0
        %1257 = vmatprep.subr.mxu0 0.0
        %1258 = vmatpush1.msra.mxu0 0.0
        %1259 = vmatprep.mubr.f32.mxu0 0.0
        %1260 = vmatmul.mubr.f32.gmra.mrb[0].mxu0 %v1193
        %v1261 = vpop.f32.mrb[0].mxu0
        %v1262 = vadd.f32 0.0, %v1261
        %v1263 = vpop.f32.mrb[0].mxu0
        %1264 = vdwg.mxu0
        %1265 = vrot.lane.b32.xlu0 %v602, 104
        %v1266 = vpop.permute.xlu0 %1265
        %1267 = vrot.lane.b32.xlu0 %v686, 104
        %v1268 = vpop.permute.xlu0 %1267
        %v1269 = vsel %vm773, %v1266, 0
        %v1271 = vsel %vm773, %v1268, 0
        %1273 = vmatprep.subr.mxu0 0.0
        %1274 = vmatpush1.xpose.msra.mxu0 %v1271
        %1275 = vmatprep.subr.mxu0 0.0
        %1276 = vmatpush1.xpose.msra.mxu0 0.0
        %1277 = vmatprep.subr.mxu0 0.0
        %1278 = vmatpush1.xpose.msra.mxu0 0.0
        %1279 = vmatprep.subr.mxu0 0.0
        %1280 = vmatpush1.xpose.msra.mxu0 0.0
        %1281 = vmatprep.subr.mxu0 0.0
        %1282 = vmatpush1.xpose.msra.mxu0 0.0
        %1283 = vmatprep.subr.mxu0 0.0
        %1284 = vmatpush1.xpose.msra.mxu0 0.0
        %1285 = vmatprep.subr.mxu0 0.0
        %1286 = vmatpush1.xpose.msra.mxu0 0.0
        %1287 = vmatprep.subr.mxu0 0.0
        %1288 = vmatpush1.xpose.msra.mxu0 0.0
        %1289 = vmatprep.subr.mxu0 0.0
        %1290 = vmatpush1.xpose.msra.mxu0 0.0
        %1291 = vmatprep.subr.mxu0 0.0
        %1292 = vmatpush1.xpose.msra.mxu0 0.0
        %1293 = vmatprep.subr.mxu0 0.0
        %1294 = vmatpush1.xpose.msra.mxu0 0.0
        %1295 = vmatprep.subr.mxu0 0.0
        %1296 = vmatpush1.xpose.msra.mxu0 0.0
        %1297 = vmatprep.subr.mxu0 0.0
        %1298 = vmatpush1.xpose.msra.mxu0 0.0
        %1299 = vmatprep.subr.mxu0 0.0
        %1300 = vmatpush1.xpose.msra.mxu0 0.0
        %1301 = vmatprep.subr.mxu0 0.0
        %1302 = vmatpush1.xpose.msra.mxu0 0.0
        %1303 = vmatprep.subr.mxu0 0.0
        %1304 = vmatpush1.xpose.msra.mxu0 0.0
        %1305 = vmatprep.subr.mxu0 0.0
        %1306 = vmatpush1.xpose.msra.mxu0 0.0
        %1307 = vmatprep.subr.mxu0 0.0
        %1308 = vmatpush1.xpose.msra.mxu0 0.0
        %1309 = vmatprep.subr.mxu0 0.0
        %1310 = vmatpush1.xpose.msra.mxu0 0.0
        %1311 = vmatprep.subr.mxu0 0.0
        %1312 = vmatpush1.xpose.msra.mxu0 0.0
        %1313 = vmatprep.subr.mxu0 0.0
        %1314 = vmatpush1.xpose.msra.mxu0 0.0
        %1315 = vmatprep.subr.mxu0 0.0
        %1316 = vmatpush1.xpose.msra.mxu0 0.0
        %1317 = vmatprep.subr.mxu0 0.0
        %1318 = vmatpush1.xpose.msra.mxu0 0.0
        %1319 = vmatprep.subr.mxu0 0.0
        %1320 = vmatpush1.xpose.msra.mxu0 0.0
        %1321 = vmatprep.subr.mxu0 0.0
        %1322 = vmatpush1.xpose.msra.mxu0 0.0
        %1323 = vmatprep.subr.mxu0 0.0
        %1324 = vmatpush1.xpose.msra.mxu0 0.0
        %1325 = vmatprep.subr.mxu0 0.0
        %1326 = vmatpush1.xpose.msra.mxu0 0.0
        %1327 = vmatprep.subr.mxu0 0.0
        %1328 = vmatpush1.xpose.msra.mxu0 0.0
        %1329 = vmatprep.subr.mxu0 0.0
        %1330 = vmatpush1.xpose.msra.mxu0 0.0
        %1331 = vmatprep.subr.mxu0 0.0
        %1332 = vmatpush1.xpose.msra.mxu0 0.0
        %1333 = vmatprep.subr.mxu0 0.0
        %1334 = vmatpush1.xpose.msra.mxu0 0.0
        %1335 = vmatprep.subr.mxu0 0.0
        %1336 = vmatpush1.xpose.msra.mxu0 0.0
        %1337 = vmatprep.mubr.f32.mxu0 0.0
        %1338 = vmatmul.mubr.f32.gmra.mrb[0].mxu0 %v1269
        %v1339 = vpop.f32.mrb[0].mxu0
        %v1340 = vadd.f32 0.0, %v1339
        %v1341 = vpop.f32.mrb[0].mxu0
        %1342 = vdwg.mxu0
        %v1343 = vsel %vm773, %v1340, -inf
        %1344 = vmax.xlane.f32.xlu0 %v1343
        %v1345 = vpop.xlane.xlu0 %1344
        %v1346 = vsub.f32 %v1340, %v1345
        %v1347 = vmul.f32 %v1346, 1.442695
        %v1348 = vpow.pop %v1347
        %v1349 = vsel %vm773, %v1348, 0.0
        %1350 = vadd.xlane.f32.xlu0 %v1349
        %v1351 = vpop.xlane.xlu0 %1350
        %v1352 = vrcp.pop %v1351
        %v1353 = vmul.f32 %v1348, %v1352
        %1354 = vrot.lane.b32.xlu0 %v770, 104
        %v1355 = vpop.permute.xlu0 %1354
        %v1358 = vsel %vm773, %v1353, 0
        %1360 = vmatprep.subr.mxu0 0.0
        %1361 = vmatpush1.msra.mxu0 %v1355
        %1362 = vmatprep.subr.mxu0 0.0
        %1363 = vmatpush1.msra.mxu0 0.0
        %1364 = vmatprep.subr.mxu0 0.0
        %1365 = vmatpush1.msra.mxu0 0.0
        %1366 = vmatprep.subr.mxu0 0.0
        %1367 = vmatpush1.msra.mxu0 0.0
        %1368 = vmatprep.subr.mxu0 0.0
        %1369 = vmatpush1.msra.mxu0 0.0
        %1370 = vmatprep.subr.mxu0 0.0
        %1371 = vmatpush1.msra.mxu0 0.0
        %1372 = vmatprep.subr.mxu0 0.0
        %1373 = vmatpush1.msra.mxu0 0.0
        %1374 = vmatprep.subr.mxu0 0.0
        %1375 = vmatpush1.msra.mxu0 0.0
        %1376 = vmatprep.subr.mxu0 0.0
        %1377 = vmatpush1.msra.mxu0 0.0
        %1378 = vmatprep.subr.mxu0 0.0
        %1379 = vmatpush1.msra.mxu0 0.0
        %1380 = vmatprep.subr.mxu0 0.0
        %1381 = vmatpush1.msra.mxu0 0.0
        %1382 = vmatprep.subr.mxu0 0.0
        %1383 = vmatpush1.msra.mxu0 0.0
        %1384 = vmatprep.subr.mxu0 0.0
        %1385 = vmatpush1.msra.mxu0 0.0
        %1386 = vmatprep.subr.mxu0 0.0
        %1387 = vmatpush1.msra.mxu0 0.0
        %1388 = vmatprep.subr.mxu0 0.0
        %1389 = vmatpush1.msra.mxu0 0.0
        %1390 = vmatprep.subr.mxu0 0.0
        %1391 = vmatpush1.msra.mxu0 0.0
        %1392 = vmatprep.subr.mxu0 0.0
        %1393 = vmatpush1.msra.mxu0 0.0
        %1394 = vmatprep.subr.mxu0 0.0
        %1395 = vmatpush1.msra.mxu0 0.0
        %1396 = vmatprep.subr.mxu0 0.0
        %1397 = vmatpush1.msra.mxu0 0.0
        %1398 = vmatprep.subr.mxu0 0.0
        %1399 = vmatpush1.msra.mxu0 0.0
        %1400 = vmatprep.subr.mxu0 0.0
        %1401 = vmatpush1.msra.mxu0 0.0
        %1402 = vmatprep.subr.mxu0 0.0
        %1403 = vmatpush1.msra.mxu0 0.0
        %1404 = vmatprep.subr.mxu0 0.0
        %1405 = vmatpush1.msra.mxu0 0.0
        %1406 = vmatprep.subr.mxu0 0.0
        %1407 = vmatpush1.msra.mxu0 0.0
        %1408 = vmatprep.subr.mxu0 0.0
        %1409 = vmatpush1.msra.mxu0 0.0
        %1410 = vmatprep.subr.mxu0 0.0
        %1411 = vmatpush1.msra.mxu0 0.0
        %1412 = vmatprep.subr.mxu0 0.0
        %1413 = vmatpush1.msra.mxu0 0.0
        %1414 = vmatprep.subr.mxu0 0.0
        %1415 = vmatpush1.msra.mxu0 0.0
        %1416 = vmatprep.subr.mxu0 0.0
        %1417 = vmatpush1.msra.mxu0 0.0
        %1418 = vmatprep.subr.mxu0 0.0
        %1419 = vmatpush1.msra.mxu0 0.0
        %1420 = vmatprep.subr.mxu0 0.0
        %1421 = vmatpush1.msra.mxu0 0.0
        %1422 = vmatprep.subr.mxu0 0.0
        %1423 = vmatpush1.msra.mxu0 0.0
        %1424 = vmatprep.mubr.f32.mxu0 0.0
        %1425 = vmatmul.mubr.f32.gmra.mrb[0].mxu0 %v1358
        %v1426 = vpop.f32.mrb[0].mxu0
        %v1427 = vadd.f32 0.0, %v1426
        %v1428 = vpop.f32.mrb[0].mxu0
        %1429 = vdwg.mxu0
        %1431 = vrot.lane.b32.xlu0 %v1097, 8
        %v1432 = vpop.permute.xlu0 %1431
        %1435 = vrot.lane.b32.xlu0 %v1262, 16
        %v1436 = vpop.permute.xlu0 %1435
        %1439 = vrot.lane.b32.xlu0 %v1427, 24
        %v1440 = vpop.permute.xlu0 %1439
        %v1442 = vsel %vm773, %v931, %v1432
        %vm1443 = vcmask 130048
        %v1444 = vsel %vm1443, %v1442, %v1436
        %vm1445 = vcmask 195584
        %v1446 = vsel %vm1445, %v1444, %v1440
        %v1447 = vld [vmem:[%s438] sm:$0xff]
        %v1448 = vadd.f32 %v1447, %v1446
        %v1449 = vsel %vm531, %v1448, 0.0
        %1450 = vadd.xlane.f32.xlu0 %v1449
        %v1451 = vpop.xlane.xlu0 %1450
        %v1452 = vrcp.pop 32.0
        %v1453 = vmul.f32 %v1451, %v1452
        %v1454 = vmul.f32 %v1448, %v1448
        %v1455 = vsel %vm531, %v1454, 0.0
        %1456 = vadd.xlane.f32.xlu0 %v1455
        %v1457 = vpop.xlane.xlu0 %1456
        %v1458 = vmul.f32 %v1457, %v1452
        %v1459 = vmul.f32 %v1453, %v1453
        %v1460 = vsub.f32 %v1458, %v1459
        %v1461 = vmax.f32 %v1460, 0.0
        %v1462 = vsub.f32 %v1448, %v1453
        %v1463 = vadd.f32 %v1461, 1e-12
        %v1464 = vrsqrt.pop %v1463
        %v1465 = vmul.f32 %v1462, %v1464
        %v1466 = vld [vmem:[%s9] sm:$0x1]
        %v1468 = vlaneseq
        %v1469 = vshrl.u32 %v1468, 7
        %v1470 = vsub.s32 0, %v1469
        %v1471 = vrot.slane %v1466, %v1470
        %v1473 = vmul.f32 %v1471, %v1465
        %v1474 = vld [vmem:[%s10] sm:$0x1]
        %v1476 = vlaneseq
        %v1477 = vshrl.u32 %v1476, 7
        %v1478 = vsub.s32 0, %v1477
        %v1479 = vrot.slane %v1474, %v1478
        %v1481 = vadd.f32 %v1473, %v1479
        %1482 = vst.msk [vmem:[%s516] sm:$0xff] %vm531, %v1481
        %s1483 = sand.u32 %s287, 1
        %s1484 = scalar_lea.sflag [#allocation4], %s1483
        %s1485 = sand.u32 %s287, 1
        %s1486 = smul.addr %s1485, 8
        %s1487 = scalar_lea.vmem [#allocation13], %s1486
        // Predicated region
        $region89: #{tpu_custom_call.1} parent=63 // pred_check
          %p1488 = pneg %p297
        $region90: #{tpu_custom_call.1} parent=63 // pred_check_branch
          %1490 = sbr.rel (%p1488) target = $region92
        $region91: #{tpu_custom_call.1} parent=63 // pred_region
          %s1492 = ssub.s32 128, 128
          %1493 = vsyncadd %s1484, %s1492
          %s1494 = smul.addr %s33, 128
          %s1495 = scalar_lea.hbm %s11, %s1494
          %s1497 = sshll.u32 %s1487, 4
          %s1498 = int_to_ptr.vmem [resolvable:$true] %s1497
          %1500 = dma.vmem_to_hbm [thread:$0]  %s1498, 128, %s1495, %s1484
        $region92: #{tpu_custom_call.1} parent=63 // pred_fallthru
          _
      $region64: #{tpu_custom_call.1} parent=5 // pred_fallthru
        _
      %p1501 = scmp.le.s32.totalorder 2, %s28
      // Predicated region
      $region93: #{tpu_custom_call.1} parent=5 // pred_check
        %p1502 = pneg %p1501
      $region94: #{tpu_custom_call.1} parent=5 // pred_check_branch
        %1504 = sbr.rel (%p1502) target = $region96
      $region95: #{tpu_custom_call.1} parent=5 // pred_region
        %s1505 = ssub.s32 %s28, 2
        // Predicated region
        $region97: #{tpu_custom_call.1} parent=95 // pred_check
          %p1506 = pneg %p303
        $region98: #{tpu_custom_call.1} parent=95 // pred_check_branch
          %1508 = sbr.rel (%p1506) target = $region100
        $region99: #{tpu_custom_call.1} parent=95 // pred_region
          %s1509 = sand.u32 %s288, 1
          %s1510 = scalar_lea.sflag [#allocation4], %s1509
          %s1511 = sand.u32 %s288, 1
          %s1512 = smul.addr %s1511, 8
          %s1513 = scalar_lea.vmem [#allocation13], %s1512
          %1514 = dma.done %s1510, 128
        $region100: #{tpu_custom_call.1} parent=95 // pred_fallthru
          _
      $region96: #{tpu_custom_call.1} parent=5 // pred_fallthru
        _
    $region6: #{tpu_custom_call.1} parent=1 // loop_footer
      %s32 = sadd.s32 1, %s28
    $region7: #{tpu_custom_call.1} parent=1 // loop_footer_branch
      %27 = sbr.rel target = $region3
    $region8: #{tpu_custom_call.1} parent=1 // loop_exit
      _
    %1515 = vsyncpa [#allocation3], 1
    %s1516 = scalar_lea.sflag [#allocation3], 1
    %1517 = vsyncpa %s1516, 1
    %1518 = vsyncpa [#allocation6], 1
    %s1519 = scalar_lea.sflag [#allocation6], 1
    %1520 = vsyncpa %s1519, 1
    %1521 = vsyncpa [#allocation9], 1
    %1522 = vsyncpa [#allocation12], 1
    %1523 = vsyncpa [#allocation4], 1
    %s1524 = scalar_lea.sflag [#allocation4], 1
    %1525 = vsyncpa %s1524, 1

</llo_original>
